<compile_context>
chip_gen: v7x
topology: tpu7x:2x2x1
jax: 0.10.0
libtpu: 0.0.40
codegen_flags: <defaults>
</compile_context>

<pallas_src>
import functools

import numpy as np

import jax
import jax.numpy as jnp
from jax.experimental import pallas as pl
from jax.experimental.pallas import tpu as pltpu


# ----------------------------------------------------------------------------
# Fused kernel: (per grid step, TB images)
#   H-pad -> conv1(+relu)+pool1 -> H-pad -> conv2(+relu)+pool2 -> fc
# ----------------------------------------------------------------------------
def _cnn_fused_kernel(x_ref, r1_ref, b1_ref, r2_ref, b2_ref, wf_ref, bf_ref,
                      o_ref, xp1_ref, xp2_ref, *,
                      kh, stride, padding, ph1, ph2):
    f32 = jnp.float32
    TB, H, W = x_ref.shape
    p = padding
    n1 = r1_ref.shape[-1]
    half1 = n1 // 2                    # = pw1 * C1  (pooled conv1 row width)
    n2 = r2_ref.shape[-1]
    half2 = n2 // 2                    # = pw2 * C2  (pooled conv2 row width)

    def conv_relu_pool(src_ref, rhs_ref, bias_ref, ph, half):
        # src_ref: (TB, rows_padded, K) activation; rows on sublanes, K dense
        #          on lanes (K = W for conv1, K = pw1*C1 for conv2).
        # rhs_ref: (kh, K, 2*half) block-Toeplitz weights, columns ordered
        #          (w-parity, w_half, out_channel); W zero-padding folded in.
        # Returns  (TB*ph, half) = relu(bias + maxpool2x2(conv(src))),
        #          rows ordered (image, pooled_row), cols (w_half, channel).
        K = src_ref.shape[-1]

        def banded_matmul(row_start):
            acc = None
            for i in range(kh):            # static unroll over kernel rows
                rows = src_ref[:, pl.ds(row_start + i, ph, stride=2 * stride), :]
                part = jnp.dot(rows.reshape(TB * ph, K), rhs_ref[i],
                               preferred_element_type=f32)
                acc = part if acc is None else acc + part
            return acc                     # (TB*ph, 2*half)

        ev = banded_matmul(0)              # conv output rows 0, 2, 4, ...
        od = banded_matmul(stride)         # conv output rows 1, 3, 5, ...
        m = jnp.maximum(ev, od)                        # max-pool over H
        m = jnp.maximum(m[:, :half], m[:, half:])      # max-pool over W (parity)
        return jnp.maximum(m + bias_ref[...], 0.0)     # bias + ReLU

    # ---- stage 1: H-pad the input (W padding lives in r1) -------------------
    if p > 0:
        xp1_ref[:, 0:p, :] = jnp.zeros((TB, p, W), f32)
        xp1_ref[:, p + H:p + H + p, :] = jnp.zeros((TB, p, W), f32)
    xp1_ref[:, p:p + H, :] = x_ref[...]

    # ---- conv1 + relu1 + pool1 ----------------------------------------------
    p1 = conv_relu_pool(xp1_ref, r1_ref, b1_ref, ph1, half1)   # (TB*ph1, pw1*C1)

    # ---- stage 2: H-pad the pooled activation -------------------------------
    if p > 0:
        xp2_ref[:, 0:p, :] = jnp.zeros((TB, p, half1), f32)
        xp2_ref[:, p + ph1:p + ph1 + p, :] = jnp.zeros((TB, p, half1), f32)
    xp2_ref[:, p:p + ph1, :] = p1.reshape(TB, ph1, half1)

    # ---- conv2 + relu2 + pool2 ----------------------------------------------
    p2 = conv_relu_pool(xp2_ref, r2_ref, b2_ref, ph2, half2)   # (TB*ph2, pw2*C2)
    p2 = p2.reshape(TB, ph2, half2)

    # ---- flatten (h, w, c) + fully connected --------------------------------
    flat = jnp.concatenate([p2[:, h, :] for h in range(ph2)], axis=-1)
    out = jnp.dot(flat, wf_ref[...], preferred_element_type=f32) + bf_ref[...]
    o_ref[...] = out.astype(o_ref.dtype)


# ----------------------------------------------------------------------------
# Host-side helpers
# ----------------------------------------------------------------------------
def _conv_out(n, k, s, p):
    return (n + 2 * p - k) // s + 1


def _choose_tb(batch):
    # Whole batch in one step for small B (the ~600-cycle per-step overhead
    # dominates the per-image compute); for larger B use >= 2 steps so v7x's
    # two TensorCores both get work.  TB is rounded to a multiple of 8 so the
    # (TB, OUT) output block satisfies the sublane constraint, and capped to
    # keep batched VMEM footprints modest.
    if batch <= 8:
        return batch
    tb = -(-batch // 2)
    return min(64, ((tb + 7) // 8) * 8)


def prepare_kernel_params(params, *, input_size, kernel_size, stride, padding):
    """One-time layout prep (init time, not per forward):
       * conv weights -> block-Toeplitz matrices rhs1 (kh, W, 2*pw1*C1) and
         rhs2 (kh, pw1*C1, 2*pw2*C2); column order (w-parity, w_half, c_out);
         the W zero-padding and the 2x2 W-pool parity split are folded in.
       * biases tiled to the pooled (w_half, c) column layout.
       * fc weight permuted from PyTorch's (c, h, w) flatten order to the
         kernel's (h, w, c) order, stored (features, out)."""
    kh = kw = kernel_size
    H = W = input_size
    c1 = params["w1"].shape[0]
    c2 = params["w2"].shape[0]
    out_f = params["wf"].shape[0]

    ho1 = _conv_out(H, kh, stride, padding)
    wo1 = _conv_out(W, kw, stride, padding)
    ph1, pw1 = ho1 // 2, wo1 // 2
    ho2 = _conv_out(ph1, kh, stride, padding)
    wo2 = _conv_out(pw1, kw, stride, padding)
    ph2, pw2 = ho2 // 2, wo2 // 2

    w1 = np.asarray(params["w1"], np.float32)          # (c1, 1,  kh, kw)
    w2 = np.asarray(params["w2"], np.float32)          # (c2, c1, kh, kw)

    def banded(weights, cin, cout, w_in_extent, pw):
        rhs = np.zeros((kh, w_in_extent * cin, 2 * pw * cout), np.float32)
        for i in range(kh):
            for parity in range(2):
                for wh in range(pw):
                    ow = 2 * wh + parity                      # conv output col
                    col = parity * pw * cout + wh * cout
                    for j in range(kw):
                        w_in = ow * stride + j - padding       # unpadded input col
                        if 0 <= w_in < w_in_extent:
                            rhs[i, w_in * cin:(w_in + 1) * cin,
                                col:col + cout] = weights[:, :, i, j].T
        return rhs

    rhs1 = banded(w1, 1, c1, W, pw1)
    rhs2 = banded(w2, c1, c2, pw1, pw2)

    b1t = np.tile(np.asarray(params["b1"], np.float32), pw1).reshape(1, pw1 * c1)
    b2t = np.tile(np.asarray(params["b2"], np.float32), pw2).reshape(1, pw2 * c2)

    wf = np.asarray(params["wf"], np.float32).reshape(out_f, c2, ph2, pw2)
    wf = wf.transpose(2, 3, 1, 0).reshape(ph2 * pw2 * c2, out_f)
    bf = np.asarray(params["bf"], np.float32).reshape(1, out_f)

    return dict(rhs1=jnp.asarray(rhs1), b1t=jnp.asarray(b1t),
                rhs2=jnp.asarray(rhs2), b2t=jnp.asarray(b2t),
                wf=jnp.asarray(wf), bf=jnp.asarray(bf))


def cnn_forward(x, kp, *, input_size, kernel_size, stride, padding):
    B = x.shape[0]
    H = W = input_size
    kh = kernel_size
    ho1 = _conv_out(H, kh, stride, padding)
    wo1 = _conv_out(W, kh, stride, padding)
    ph1, pw1 = ho1 // 2, wo1 // 2
    ho2 = _conv_out(ph1, kh, stride, padding)
    wo2 = _conv_out(pw1, kh, stride, padding)
    ph2, pw2 = ho2 // 2, wo2 // 2

    half1 = kp["b1t"].shape[-1]          # pw1 * C1
    out_f = kp["bf"].shape[-1]

    TB = _choose_tb(B)
    grid = -(-B // TB)
    b_pad = grid * TB

    x3 = x.reshape(B, H, W).astype(jnp.float32)
    if b_pad != B:
        x3 = jnp.concatenate(
            [x3, jnp.zeros((b_pad - B, H, W), jnp.float32)], axis=0)

    kern = functools.partial(
        _cnn_fused_kernel, kh=kh, stride=stride, padding=padding,
        ph1=ph1, ph2=ph2)

    out = pl.pallas_call(
        kern,
        out_shape=jax.ShapeDtypeStruct((b_pad, out_f), jnp.float32),
        grid=(grid,),
        in_specs=[
            pl.BlockSpec((TB, H, W), lambda b: (b, 0, 0)),          # images
            # Grid-invariant constants (index_map is constant, so they are
            # DMA'd once and never re-fetched across grid steps).
            pl.BlockSpec(kp["rhs1"].shape, lambda b: (0, 0, 0)),    # conv1 banded
            pl.BlockSpec(kp["b1t"].shape, lambda b: (0, 0)),        # bias1 tiled
            pl.BlockSpec(kp["rhs2"].shape, lambda b: (0, 0, 0)),    # conv2 banded
            pl.BlockSpec(kp["b2t"].shape, lambda b: (0, 0)),        # bias2 tiled
            pl.BlockSpec(kp["wf"].shape, lambda b: (0, 0)),         # fc weight
            pl.BlockSpec(kp["bf"].shape, lambda b: (0, 0)),         # fc bias
        ],
        out_specs=pl.BlockSpec((TB, out_f), lambda b: (b, 0)),
        scratch_shapes=[
            pltpu.VMEM((TB, H + 2 * padding, W), jnp.float32),        # xp1
            pltpu.VMEM((TB, ph1 + 2 * padding, half1), jnp.float32),  # xp2
        ],
        compiler_params=pltpu.CompilerParams(
            dimension_semantics=("parallel",)),
    )(x3, kp["rhs1"], kp["b1t"], kp["rhs2"], kp["b2t"], kp["wf"], kp["bf"])
    return out[:B]


def init_params(key, kernel_size, fc_in, output_size):
    keys = jax.random.split(key, 6)

    def u(k, shape, fan_in):
        bound = 1.0 / jnp.sqrt(float(fan_in))
        return jax.random.uniform(k, shape, jnp.float32, -bound, bound)

    k2 = kernel_size * kernel_size
    return dict(
        w1=u(keys[0], (16, 1, kernel_size, kernel_size), 1 * k2),
        b1=u(keys[1], (16,), 1 * k2),
        w2=u(keys[2], (32, 16, kernel_size, kernel_size), 16 * k2),
        b2=u(keys[3], (32,), 16 * k2),
        wf=u(keys[4], (output_size, fc_in), fc_in),
        bf=u(keys[5], (output_size,), fc_in),
    )


if __name__ == "__main__":
    batch = 2
    input_size = 16
    output_size = 10
    kernel_size = 3
    stride = 1
    padding = 1

    h1 = _conv_out(input_size, kernel_size, stride, padding) // 2   # conv1+pool1
    h2 = _conv_out(h1, kernel_size, stride, padding) // 2           # conv2+pool2
    fc_in = 32 * h2 * h2

    key = jax.random.PRNGKey(0)
    k_x, k_p = jax.random.split(key)
    x = jax.random.normal(k_x, (batch, input_size, input_size), jnp.float32)
    params = init_params(k_p, kernel_size, fc_in, output_size)
    kparams = prepare_kernel_params(params, input_size=input_size,
                                    kernel_size=kernel_size, stride=stride,
                                    padding=padding)

    fwd = jax.jit(functools.partial(
        cnn_forward, input_size=input_size, kernel_size=kernel_size,
        stride=stride, padding=padding))
    out = jax.block_until_ready(fwd(x, kparams))
    assert out.shape == (batch, output_size)
    print("KERNEL_OK")
</pallas_src>

<mosaic_0001>
module attributes {stable_mosaic.version = 11 : i64} {
  func.func @_cnn_fused_kernel(%arg0: i32, %arg1: memref<2x16x16xf32, #tpu.memory_space<vmem>>, %arg2: memref<3x16x256xf32, #tpu.memory_space<vmem>>, %arg3: memref<1x128xf32, #tpu.memory_space<vmem>>, %arg4: memref<3x128x256xf32, #tpu.memory_space<vmem>>, %arg5: memref<1x128xf32, #tpu.memory_space<vmem>>, %arg6: memref<512x10xf32, #tpu.memory_space<vmem>>, %arg7: memref<1x10xf32, #tpu.memory_space<vmem>>, %arg8: memref<2x10xf32, #tpu.memory_space<vmem>>, %arg9: memref<2x18x16xf32, #tpu.memory_space<vmem>>, %arg10: memref<2x10x128xf32, #tpu.memory_space<vmem>>) attributes {dimension_semantics = [#tpu.dimension_semantics<parallel>], iteration_bounds = array<i64: 1>, scalar_prefetch = 0 : i64, scratch_operands = 2 : i64, tpu.core_type = #tpu.core_type<tc>, window_params = [{transform_indices = @transform_0, window_bounds = array<i64: 2, 16, 16>}, {pipeline_mode = #tpu.pipeline_mode<synchronous>, transform_indices = @transform_1, window_bounds = array<i64: 3, 16, 256>}, {pipeline_mode = #tpu.pipeline_mode<synchronous>, transform_indices = @transform_2, window_bounds = array<i64: 1, 128>}, {pipeline_mode = #tpu.pipeline_mode<synchronous>, transform_indices = @transform_3, window_bounds = array<i64: 3, 128, 256>}, {pipeline_mode = #tpu.pipeline_mode<synchronous>, transform_indices = @transform_4, window_bounds = array<i64: 1, 128>}, {pipeline_mode = #tpu.pipeline_mode<synchronous>, transform_indices = @transform_5, window_bounds = array<i64: 512, 10>}, {pipeline_mode = #tpu.pipeline_mode<synchronous>, transform_indices = @transform_6, window_bounds = array<i64: 1, 10>}, {transform_indices = @transform_7, window_bounds = array<i64: 2, 10>}]} {
    %cst = arith.constant 0.000000e+00 : f32
    %0 = vector.broadcast %cst : f32 to vector<2x1x16xf32>
    %c0 = arith.constant 0 : index
    %c0_0 = arith.constant 0 : index
    %c0_1 = arith.constant 0 : index
    %1 = vector.load %arg9[%c0, %c0_0, %c0_1] : memref<2x18x16xf32, #tpu.memory_space<vmem>>, vector<2x1x16xf32>
    tpu.vector_store %arg9[%c0, %c0_0, %c0_1], %0 {strides = array<i32>} : memref<2x18x16xf32, #tpu.memory_space<vmem>>, vector<2x1x16xf32>,
    %cst_2 = arith.constant 0.000000e+00 : f32
    %2 = vector.broadcast %cst_2 : f32 to vector<2x1x16xf32>
    %c0_3 = arith.constant 0 : index
    %c17 = arith.constant 17 : index
    %c0_4 = arith.constant 0 : index
    %3 = vector.load %arg9[%c0_3, %c17, %c0_4] : memref<2x18x16xf32, #tpu.memory_space<vmem>>, vector<2x1x16xf32>
    tpu.vector_store %arg9[%c0_3, %c17, %c0_4], %2 {strides = array<i32>} : memref<2x18x16xf32, #tpu.memory_space<vmem>>, vector<2x1x16xf32>,
    %c0_5 = arith.constant 0 : index
    %c0_6 = arith.constant 0 : index
    %c0_7 = arith.constant 0 : index
    %4 = vector.load %arg1[%c0_5, %c0_6, %c0_7] : memref<2x16x16xf32, #tpu.memory_space<vmem>>, vector<2x16x16xf32>
    %c0_8 = arith.constant 0 : index
    %c1 = arith.constant 1 : index
    %c0_9 = arith.constant 0 : index
    %5 = vector.load %arg9[%c0_8, %c1, %c0_9] : memref<2x18x16xf32, #tpu.memory_space<vmem>>, vector<2x16x16xf32>
    tpu.vector_store %arg9[%c0_8, %c1, %c0_9], %4 {strides = array<i32>} : memref<2x18x16xf32, #tpu.memory_space<vmem>>, vector<2x16x16xf32>,
    %c0_10 = arith.constant 0 : index
    %c0_11 = arith.constant 0 : index
    %c0_12 = arith.constant 0 : index
    %6 = tpu.strided_load %arg9[%c0_10, %c0_11, %c0_12] {strides = array<i32: 1, 2, 1>} : memref<2x18x16xf32, #tpu.memory_space<vmem>>, vector<2x8x16xf32>
    %7 = vector.shape_cast %6 : vector<2x8x16xf32> to vector<16x16xf32>
    %c0_13 = arith.constant 0 : index
    %c0_14 = arith.constant 0 : index
    %c0_15 = arith.constant 0 : index
    %8 = vector.load %arg2[%c0_13, %c0_14, %c0_15] : memref<3x16x256xf32, #tpu.memory_space<vmem>>, vector<1x16x256xf32>
    %9 = vector.shape_cast %8 : vector<1x16x256xf32> to vector<16x256xf32>
    %cst_16 = arith.constant dense<0.000000e+00> : vector<16x256xf32>
    %10 = tpu.matmul %7, %9, %cst_16 {dimension_numbers = #tpu.dot_dimension_numbers<[1], [0], [0], [1], [0, 0, 1, 1], [], []>} : vector<16x16xf32>, vector<16x256xf32>, vector<16x256xf32> -> vector<16x256xf32>
    %c0_17 = arith.constant 0 : index
    %c1_18 = arith.constant 1 : index
    %c0_19 = arith.constant 0 : index
    %11 = tpu.strided_load %arg9[%c0_17, %c1_18, %c0_19] {strides = array<i32: 1, 2, 1>} : memref<2x18x16xf32, #tpu.memory_space<vmem>>, vector<2x8x16xf32>
    %12 = vector.shape_cast %11 : vector<2x8x16xf32> to vector<16x16xf32>
    %c1_20 = arith.constant 1 : index
    %c0_21 = arith.constant 0 : index
    %c0_22 = arith.constant 0 : index
    %13 = vector.load %arg2[%c1_20, %c0_21, %c0_22] : memref<3x16x256xf32, #tpu.memory_space<vmem>>, vector<1x16x256xf32>
    %14 = vector.shape_cast %13 : vector<1x16x256xf32> to vector<16x256xf32>
    %cst_23 = arith.constant dense<0.000000e+00> : vector<16x256xf32>
    %15 = tpu.matmul %12, %14, %cst_23 {dimension_numbers = #tpu.dot_dimension_numbers<[1], [0], [0], [1], [0, 0, 1, 1], [], []>} : vector<16x16xf32>, vector<16x256xf32>, vector<16x256xf32> -> vector<16x256xf32>
    %16 = arith.addf %10, %15 : vector<16x256xf32>
    %c0_24 = arith.constant 0 : index
    %c2 = arith.constant 2 : index
    %c0_25 = arith.constant 0 : index
    %17 = tpu.strided_load %arg9[%c0_24, %c2, %c0_25] {strides = array<i32: 1, 2, 1>} : memref<2x18x16xf32, #tpu.memory_space<vmem>>, vector<2x8x16xf32>
    %18 = vector.shape_cast %17 : vector<2x8x16xf32> to vector<16x16xf32>
    %c2_26 = arith.constant 2 : index
    %c0_27 = arith.constant 0 : index
    %c0_28 = arith.constant 0 : index
    %19 = vector.load %arg2[%c2_26, %c0_27, %c0_28] : memref<3x16x256xf32, #tpu.memory_space<vmem>>, vector<1x16x256xf32>
    %20 = vector.shape_cast %19 : vector<1x16x256xf32> to vector<16x256xf32>
    %cst_29 = arith.constant dense<0.000000e+00> : vector<16x256xf32>
    %21 = tpu.matmul %18, %20, %cst_29 {dimension_numbers = #tpu.dot_dimension_numbers<[1], [0], [0], [1], [0, 0, 1, 1], [], []>} : vector<16x16xf32>, vector<16x256xf32>, vector<16x256xf32> -> vector<16x256xf32>
    %22 = arith.addf %16, %21 : vector<16x256xf32>
    %c0_30 = arith.constant 0 : index
    %c1_31 = arith.constant 1 : index
    %c0_32 = arith.constant 0 : index
    %23 = tpu.strided_load %arg9[%c0_30, %c1_31, %c0_32] {strides = array<i32: 1, 2, 1>} : memref<2x18x16xf32, #tpu.memory_space<vmem>>, vector<2x8x16xf32>
    %24 = vector.shape_cast %23 : vector<2x8x16xf32> to vector<16x16xf32>
    %c0_33 = arith.constant 0 : index
    %c0_34 = arith.constant 0 : index
    %c0_35 = arith.constant 0 : index
    %25 = vector.load %arg2[%c0_33, %c0_34, %c0_35] : memref<3x16x256xf32, #tpu.memory_space<vmem>>, vector<1x16x256xf32>
    %26 = vector.shape_cast %25 : vector<1x16x256xf32> to vector<16x256xf32>
    %cst_36 = arith.constant dense<0.000000e+00> : vector<16x256xf32>
    %27 = tpu.matmul %24, %26, %cst_36 {dimension_numbers = #tpu.dot_dimension_numbers<[1], [0], [0], [1], [0, 0, 1, 1], [], []>} : vector<16x16xf32>, vector<16x256xf32>, vector<16x256xf32> -> vector<16x256xf32>
    %c0_37 = arith.constant 0 : index
    %c2_38 = arith.constant 2 : index
    %c0_39 = arith.constant 0 : index
    %28 = tpu.strided_load %arg9[%c0_37, %c2_38, %c0_39] {strides = array<i32: 1, 2, 1>} : memref<2x18x16xf32, #tpu.memory_space<vmem>>, vector<2x8x16xf32>
    %29 = vector.shape_cast %28 : vector<2x8x16xf32> to vector<16x16xf32>
    %c1_40 = arith.constant 1 : index
    %c0_41 = arith.constant 0 : index
    %c0_42 = arith.constant 0 : index
    %30 = vector.load %arg2[%c1_40, %c0_41, %c0_42] : memref<3x16x256xf32, #tpu.memory_space<vmem>>, vector<1x16x256xf32>
    %31 = vector.shape_cast %30 : vector<1x16x256xf32> to vector<16x256xf32>
    %cst_43 = arith.constant dense<0.000000e+00> : vector<16x256xf32>
    %32 = tpu.matmul %29, %31, %cst_43 {dimension_numbers = #tpu.dot_dimension_numbers<[1], [0], [0], [1], [0, 0, 1, 1], [], []>} : vector<16x16xf32>, vector<16x256xf32>, vector<16x256xf32> -> vector<16x256xf32>
    %33 = arith.addf %27, %32 : vector<16x256xf32>
    %c0_44 = arith.constant 0 : index
    %c3 = arith.constant 3 : index
    %c0_45 = arith.constant 0 : index
    %34 = tpu.strided_load %arg9[%c0_44, %c3, %c0_45] {strides = array<i32: 1, 2, 1>} : memref<2x18x16xf32, #tpu.memory_space<vmem>>, vector<2x8x16xf32>
    %35 = vector.shape_cast %34 : vector<2x8x16xf32> to vector<16x16xf32>
    %c2_46 = arith.constant 2 : index
    %c0_47 = arith.constant 0 : index
    %c0_48 = arith.constant 0 : index
    %36 = vector.load %arg2[%c2_46, %c0_47, %c0_48] : memref<3x16x256xf32, #tpu.memory_space<vmem>>, vector<1x16x256xf32>
    %37 = vector.shape_cast %36 : vector<1x16x256xf32> to vector<16x256xf32>
    %cst_49 = arith.constant dense<0.000000e+00> : vector<16x256xf32>
    %38 = tpu.matmul %35, %37, %cst_49 {dimension_numbers = #tpu.dot_dimension_numbers<[1], [0], [0], [1], [0, 0, 1, 1], [], []>} : vector<16x16xf32>, vector<16x256xf32>, vector<16x256xf32> -> vector<16x256xf32>
    %39 = arith.addf %33, %38 : vector<16x256xf32>
    %40 = arith.maximumf %22, %39 : vector<16x256xf32>
    %41 = vector.extract_strided_slice %40 {offsets = [0, 0], sizes = [16, 128], strides = [1, 1]} : vector<16x256xf32> to vector<16x128xf32>
    %42 = vector.extract_strided_slice %40 {offsets = [0, 128], sizes = [16, 128], strides = [1, 1]} : vector<16x256xf32> to vector<16x128xf32>
    %43 = arith.maximumf %41, %42 : vector<16x128xf32>
    %c0_50 = arith.constant 0 : index
    %c0_51 = arith.constant 0 : index
    %44 = vector.load %arg3[%c0_50, %c0_51] : memref<1x128xf32, #tpu.memory_space<vmem>>, vector<1x128xf32>
    %45 = vector.broadcast %44 : vector<1x128xf32> to vector<16x128xf32>
    %46 = arith.addf %43, %45 : vector<16x128xf32>
    %cst_52 = arith.constant 0.000000e+00 : f32
    %47 = vector.broadcast %cst_52 : f32 to vector<16x128xf32>
    %48 = arith.maximumf %46, %47 : vector<16x128xf32>
    %cst_53 = arith.constant 0.000000e+00 : f32
    %49 = vector.broadcast %cst_53 : f32 to vector<2x1x128xf32>
    %c0_54 = arith.constant 0 : index
    %c0_55 = arith.constant 0 : index
    %c0_56 = arith.constant 0 : index
    %50 = vector.load %arg10[%c0_54, %c0_55, %c0_56] : memref<2x10x128xf32, #tpu.memory_space<vmem>>, vector<2x1x128xf32>
    tpu.vector_store %arg10[%c0_54, %c0_55, %c0_56], %49 {strides = array<i32>} : memref<2x10x128xf32, #tpu.memory_space<vmem>>, vector<2x1x128xf32>,
    %cst_57 = arith.constant 0.000000e+00 : f32
    %51 = vector.broadcast %cst_57 : f32 to vector<2x1x128xf32>
    %c0_58 = arith.constant 0 : index
    %c9 = arith.constant 9 : index
    %c0_59 = arith.constant 0 : index
    %52 = vector.load %arg10[%c0_58, %c9, %c0_59] : memref<2x10x128xf32, #tpu.memory_space<vmem>>, vector<2x1x128xf32>
    tpu.vector_store %arg10[%c0_58, %c9, %c0_59], %51 {strides = array<i32>} : memref<2x10x128xf32, #tpu.memory_space<vmem>>, vector<2x1x128xf32>,
    %53 = vector.shape_cast %48 : vector<16x128xf32> to vector<2x8x128xf32>
    %c0_60 = arith.constant 0 : index
    %c1_61 = arith.constant 1 : index
    %c0_62 = arith.constant 0 : index
    %54 = vector.load %arg10[%c0_60, %c1_61, %c0_62] : memref<2x10x128xf32, #tpu.memory_space<vmem>>, vector<2x8x128xf32>
    tpu.vector_store %arg10[%c0_60, %c1_61, %c0_62], %53 {strides = array<i32>} : memref<2x10x128xf32, #tpu.memory_space<vmem>>, vector<2x8x128xf32>,
    %c0_63 = arith.constant 0 : index
    %c0_64 = arith.constant 0 : index
    %c0_65 = arith.constant 0 : index
    %55 = tpu.strided_load %arg10[%c0_63, %c0_64, %c0_65] {strides = array<i32: 1, 2, 1>} : memref<2x10x128xf32, #tpu.memory_space<vmem>>, vector<2x4x128xf32>
    %56 = vector.shape_cast %55 : vector<2x4x128xf32> to vector<8x128xf32>
    %c0_66 = arith.constant 0 : index
    %c0_67 = arith.constant 0 : index
    %c0_68 = arith.constant 0 : index
    %57 = vector.load %arg4[%c0_66, %c0_67, %c0_68] : memref<3x128x256xf32, #tpu.memory_space<vmem>>, vector<1x128x256xf32>
    %58 = vector.shape_cast %57 : vector<1x128x256xf32> to vector<128x256xf32>
    %cst_69 = arith.constant dense<0.000000e+00> : vector<8x256xf32>
    %59 = tpu.matmul %56, %58, %cst_69 {dimension_numbers = #tpu.dot_dimension_numbers<[1], [0], [0], [1], [0, 0, 1, 1], [], []>} : vector<8x128xf32>, vector<128x256xf32>, vector<8x256xf32> -> vector<8x256xf32>
    %c0_70 = arith.constant 0 : index
    %c1_71 = arith.constant 1 : index
    %c0_72 = arith.constant 0 : index
    %60 = tpu.strided_load %arg10[%c0_70, %c1_71, %c0_72] {strides = array<i32: 1, 2, 1>} : memref<2x10x128xf32, #tpu.memory_space<vmem>>, vector<2x4x128xf32>
    %61 = vector.shape_cast %60 : vector<2x4x128xf32> to vector<8x128xf32>
    %c1_73 = arith.constant 1 : index
    %c0_74 = arith.constant 0 : index
    %c0_75 = arith.constant 0 : index
    %62 = vector.load %arg4[%c1_73, %c0_74, %c0_75] : memref<3x128x256xf32, #tpu.memory_space<vmem>>, vector<1x128x256xf32>
    %63 = vector.shape_cast %62 : vector<1x128x256xf32> to vector<128x256xf32>
    %cst_76 = arith.constant dense<0.000000e+00> : vector<8x256xf32>
    %64 = tpu.matmul %61, %63, %cst_76 {dimension_numbers = #tpu.dot_dimension_numbers<[1], [0], [0], [1], [0, 0, 1, 1], [], []>} : vector<8x128xf32>, vector<128x256xf32>, vector<8x256xf32> -> vector<8x256xf32>
    %65 = arith.addf %59, %64 : vector<8x256xf32>
    %c0_77 = arith.constant 0 : index
    %c2_78 = arith.constant 2 : index
    %c0_79 = arith.constant 0 : index
    %66 = tpu.strided_load %arg10[%c0_77, %c2_78, %c0_79] {strides = array<i32: 1, 2, 1>} : memref<2x10x128xf32, #tpu.memory_space<vmem>>, vector<2x4x128xf32>
    %67 = vector.shape_cast %66 : vector<2x4x128xf32> to vector<8x128xf32>
    %c2_80 = arith.constant 2 : index
    %c0_81 = arith.constant 0 : index
    %c0_82 = arith.constant 0 : index
    %68 = vector.load %arg4[%c2_80, %c0_81, %c0_82] : memref<3x128x256xf32, #tpu.memory_space<vmem>>, vector<1x128x256xf32>
    %69 = vector.shape_cast %68 : vector<1x128x256xf32> to vector<128x256xf32>
    %cst_83 = arith.constant dense<0.000000e+00> : vector<8x256xf32>
    %70 = tpu.matmul %67, %69, %cst_83 {dimension_numbers = #tpu.dot_dimension_numbers<[1], [0], [0], [1], [0, 0, 1, 1], [], []>} : vector<8x128xf32>, vector<128x256xf32>, vector<8x256xf32> -> vector<8x256xf32>
    %71 = arith.addf %65, %70 : vector<8x256xf32>
    %c0_84 = arith.constant 0 : index
    %c1_85 = arith.constant 1 : index
    %c0_86 = arith.constant 0 : index
    %72 = tpu.strided_load %arg10[%c0_84, %c1_85, %c0_86] {strides = array<i32: 1, 2, 1>} : memref<2x10x128xf32, #tpu.memory_space<vmem>>, vector<2x4x128xf32>
    %73 = vector.shape_cast %72 : vector<2x4x128xf32> to vector<8x128xf32>
    %c0_87 = arith.constant 0 : index
    %c0_88 = arith.constant 0 : index
    %c0_89 = arith.constant 0 : index
    %74 = vector.load %arg4[%c0_87, %c0_88, %c0_89] : memref<3x128x256xf32, #tpu.memory_space<vmem>>, vector<1x128x256xf32>
    %75 = vector.shape_cast %74 : vector<1x128x256xf32> to vector<128x256xf32>
    %cst_90 = arith.constant dense<0.000000e+00> : vector<8x256xf32>
    %76 = tpu.matmul %73, %75, %cst_90 {dimension_numbers = #tpu.dot_dimension_numbers<[1], [0], [0], [1], [0, 0, 1, 1], [], []>} : vector<8x128xf32>, vector<128x256xf32>, vector<8x256xf32> -> vector<8x256xf32>
    %c0_91 = arith.constant 0 : index
    %c2_92 = arith.constant 2 : index
    %c0_93 = arith.constant 0 : index
    %77 = tpu.strided_load %arg10[%c0_91, %c2_92, %c0_93] {strides = array<i32: 1, 2, 1>} : memref<2x10x128xf32, #tpu.memory_space<vmem>>, vector<2x4x128xf32>
    %78 = vector.shape_cast %77 : vector<2x4x128xf32> to vector<8x128xf32>
    %c1_94 = arith.constant 1 : index
    %c0_95 = arith.constant 0 : index
    %c0_96 = arith.constant 0 : index
    %79 = vector.load %arg4[%c1_94, %c0_95, %c0_96] : memref<3x128x256xf32, #tpu.memory_space<vmem>>, vector<1x128x256xf32>
    %80 = vector.shape_cast %79 : vector<1x128x256xf32> to vector<128x256xf32>
    %cst_97 = arith.constant dense<0.000000e+00> : vector<8x256xf32>
    %81 = tpu.matmul %78, %80, %cst_97 {dimension_numbers = #tpu.dot_dimension_numbers<[1], [0], [0], [1], [0, 0, 1, 1], [], []>} : vector<8x128xf32>, vector<128x256xf32>, vector<8x256xf32> -> vector<8x256xf32>
    %82 = arith.addf %76, %81 : vector<8x256xf32>
    %c0_98 = arith.constant 0 : index
    %c3_99 = arith.constant 3 : index
    %c0_100 = arith.constant 0 : index
    %83 = tpu.strided_load %arg10[%c0_98, %c3_99, %c0_100] {strides = array<i32: 1, 2, 1>} : memref<2x10x128xf32, #tpu.memory_space<vmem>>, vector<2x4x128xf32>
    %84 = vector.shape_cast %83 : vector<2x4x128xf32> to vector<8x128xf32>
    %c2_101 = arith.constant 2 : index
    %c0_102 = arith.constant 0 : index
    %c0_103 = arith.constant 0 : index
    %85 = vector.load %arg4[%c2_101, %c0_102, %c0_103] : memref<3x128x256xf32, #tpu.memory_space<vmem>>, vector<1x128x256xf32>
    %86 = vector.shape_cast %85 : vector<1x128x256xf32> to vector<128x256xf32>
    %cst_104 = arith.constant dense<0.000000e+00> : vector<8x256xf32>
    %87 = tpu.matmul %84, %86, %cst_104 {dimension_numbers = #tpu.dot_dimension_numbers<[1], [0], [0], [1], [0, 0, 1, 1], [], []>} : vector<8x128xf32>, vector<128x256xf32>, vector<8x256xf32> -> vector<8x256xf32>
    %88 = arith.addf %82, %87 : vector<8x256xf32>
    %89 = arith.maximumf %71, %88 : vector<8x256xf32>
    %90 = vector.extract_strided_slice %89 {offsets = [0, 0], sizes = [8, 128], strides = [1, 1]} : vector<8x256xf32> to vector<8x128xf32>
    %91 = vector.extract_strided_slice %89 {offsets = [0, 128], sizes = [8, 128], strides = [1, 1]} : vector<8x256xf32> to vector<8x128xf32>
    %92 = arith.maximumf %90, %91 : vector<8x128xf32>
    %c0_105 = arith.constant 0 : index
    %c0_106 = arith.constant 0 : index
    %93 = vector.load %arg5[%c0_105, %c0_106] : memref<1x128xf32, #tpu.memory_space<vmem>>, vector<1x128xf32>
    %94 = vector.broadcast %93 : vector<1x128xf32> to vector<8x128xf32>
    %95 = arith.addf %92, %94 : vector<8x128xf32>
    %cst_107 = arith.constant 0.000000e+00 : f32
    %96 = vector.broadcast %cst_107 : f32 to vector<8x128xf32>
    %97 = arith.maximumf %95, %96 : vector<8x128xf32>
    %98 = vector.shape_cast %97 : vector<8x128xf32> to vector<2x4x128xf32>
    %99 = vector.extract_strided_slice %98 {offsets = [0, 0, 0], sizes = [2, 1, 128], strides = [1, 1, 1]} : vector<2x4x128xf32> to vector<2x1x128xf32>
    %100 = vector.shape_cast %99 : vector<2x1x128xf32> to vector<2x128xf32>
    %101 = vector.extract_strided_slice %98 {offsets = [0, 1, 0], sizes = [2, 1, 128], strides = [1, 1, 1]} : vector<2x4x128xf32> to vector<2x1x128xf32>
    %102 = vector.shape_cast %101 : vector<2x1x128xf32> to vector<2x128xf32>
    %103 = vector.extract_strided_slice %98 {offsets = [0, 2, 0], sizes = [2, 1, 128], strides = [1, 1, 1]} : vector<2x4x128xf32> to vector<2x1x128xf32>
    %104 = vector.shape_cast %103 : vector<2x1x128xf32> to vector<2x128xf32>
    %105 = vector.extract_strided_slice %98 {offsets = [0, 3, 0], sizes = [2, 1, 128], strides = [1, 1, 1]} : vector<2x4x128xf32> to vector<2x1x128xf32>
    %106 = vector.shape_cast %105 : vector<2x1x128xf32> to vector<2x128xf32>
    %107 = tpu.concatenate %100, %102, %104, %106 in 1 : vector<2x128xf32>, vector<2x128xf32>, vector<2x128xf32>, vector<2x128xf32> -> vector<2x512xf32>
    %c0_108 = arith.constant 0 : index
    %c0_109 = arith.constant 0 : index
    %108 = vector.load %arg6[%c0_108, %c0_109] : memref<512x10xf32, #tpu.memory_space<vmem>>, vector<512x10xf32>
    %cst_110 = arith.constant dense<0.000000e+00> : vector<2x10xf32>
    %109 = tpu.matmul %107, %108, %cst_110 {dimension_numbers = #tpu.dot_dimension_numbers<[1], [0], [0], [1], [0, 0, 1, 1], [], []>} : vector<2x512xf32>, vector<512x10xf32>, vector<2x10xf32> -> vector<2x10xf32>
    %c0_111 = arith.constant 0 : index
    %c0_112 = arith.constant 0 : index
    %110 = vector.load %arg7[%c0_111, %c0_112] : memref<1x10xf32, #tpu.memory_space<vmem>>, vector<1x10xf32>
    %111 = vector.broadcast %110 : vector<1x10xf32> to vector<2x10xf32>
    %112 = arith.addf %109, %111 : vector<2x10xf32>
    %c0_113 = arith.constant 0 : index
    %c0_114 = arith.constant 0 : index
    %113 = vector.load %arg8[%c0_113, %c0_114] : memref<2x10xf32, #tpu.memory_space<vmem>>, vector<2x10xf32>
    tpu.vector_store %arg8[%c0_113, %c0_114], %112 {strides = array<i32>} : memref<2x10xf32, #tpu.memory_space<vmem>>, vector<2x10xf32>,
    return
  }
  func.func @transform_0(%arg0: i32) -> (i32, i32, i32) {
    %c0_i32 = arith.constant 0 : i32
    %c0_i32_0 = arith.constant 0 : i32
    %c0_i32_1 = arith.constant 0 : i32
    return %arg0, %c0_i32, %c0_i32_0 : i32, i32, i32
  }
  func.func @transform_1(%arg0: i32) -> (i32, i32, i32) {
    %c0_i32 = arith.constant 0 : i32
    %c0_i32_0 = arith.constant 0 : i32
    %c0_i32_1 = arith.constant 0 : i32
    %c0_i32_2 = arith.constant 0 : i32
    return %c0_i32, %c0_i32_0, %c0_i32_1 : i32, i32, i32
  }
  func.func @transform_2(%arg0: i32) -> (i32, i32) {
    %c0_i32 = arith.constant 0 : i32
    %c0_i32_0 = arith.constant 0 : i32
    %c0_i32_1 = arith.constant 0 : i32
    return %c0_i32, %c0_i32_0 : i32, i32
  }
  func.func @transform_3(%arg0: i32) -> (i32, i32, i32) {
    %c0_i32 = arith.constant 0 : i32
    %c0_i32_0 = arith.constant 0 : i32
    %c0_i32_1 = arith.constant 0 : i32
    %c0_i32_2 = arith.constant 0 : i32
    return %c0_i32, %c0_i32_0, %c0_i32_1 : i32, i32, i32
  }
  func.func @transform_4(%arg0: i32) -> (i32, i32) {
    %c0_i32 = arith.constant 0 : i32
    %c0_i32_0 = arith.constant 0 : i32
    %c0_i32_1 = arith.constant 0 : i32
    return %c0_i32, %c0_i32_0 : i32, i32
  }
  func.func @transform_5(%arg0: i32) -> (i32, i32) {
    %c0_i32 = arith.constant 0 : i32
    %c0_i32_0 = arith.constant 0 : i32
    %c0_i32_1 = arith.constant 0 : i32
    return %c0_i32, %c0_i32_0 : i32, i32
  }
  func.func @transform_6(%arg0: i32) -> (i32, i32) {
    %c0_i32 = arith.constant 0 : i32
    %c0_i32_0 = arith.constant 0 : i32
    %c0_i32_1 = arith.constant 0 : i32
    return %c0_i32, %c0_i32_0 : i32, i32
  }
  func.func @transform_7(%arg0: i32) -> (i32, i32) {
    %c0_i32 = arith.constant 0 : i32
    %c0_i32_0 = arith.constant 0 : i32
    return %arg0, %c0_i32 : i32, i32
  }
}

</mosaic_0001>

<llo_original>
// kernel: cnn_forward.1
$region0: #{cnn_forward.1}
  #allocation0 [shape = 'u32[]', space=smem, size = 0x4, offset = 0x4, fixed_abs, tag = 'smem constant byte address 0x4 - core index']
  #allocation1 [shape = 'u32[144,128]{1,0:T(1,128)}', space=vmem, size = 0x12000, scoped, tag = 'internal scratch']
  #allocation2 [shape = 'f32[2,18,16]{2,1,0:T(8,128)}', space=vmem, size = 0x6000, scoped, tag = 'scratch operand']
  #allocation3 [shape = 'f32[2,10,128]{2,1,0:T(8,128)}', space=vmem, size = 0x4000, scoped, tag = 'scratch operand']
  %s0 = inlined_call_operand.vmem [shape: f32[2,16,16], index: 0, kind: input, shape index: {}]
  %s1 = inlined_call_operand.vmem [shape: f32[3,16,256], index: 1, kind: input, shape index: {}]
  %s2 = inlined_call_operand.vmem [shape: f32[1,128], index: 2, kind: input, shape index: {}]
  %s3 = inlined_call_operand.hbm [shape: f32[3,128,256], index: 3, kind: input, shape index: {}]
  %s4 = inlined_call_operand.vmem [shape: f32[1,128], index: 4, kind: input, shape index: {}]
  %s5 = inlined_call_operand.vmem [shape: f32[512,10], index: 5, kind: input, shape index: {}]
  %s6 = inlined_call_operand.vmem [shape: f32[1,10], index: 6, kind: input, shape index: {}]
  %s7 = inlined_call_operand.hbm [shape: f32[2,10], index: 7, kind: output, shape index: {}]
  %s8 = sld [smem:[#allocation0]]
  $region42: #{cnn_forward.1} parent=0
    _
  %s10 = ssub.s32 1, %s8
  %s11 = scalar_select 0, %s10, %s8
  $region1: #{cnn_forward.1} parent=0
    #allocation4 [shape = 'u8[393216]{0}', space=vmem, size = 0x60000, scoped, tag = 'input window, operand 3, single buffered']
    #allocation5 [shape = 's32[1]{0}', space=sflag, size = 0x4, scoped, tag = 'scoped memory for cnn_forward.1']
    #allocation6 [shape = 's32[1]{0}', space=sflag, size = 0x4, scoped, tag = 'scoped memory for cnn_forward.1']
    #allocation7 [shape = 'u8[1024]{0}', space=vmem, size = 0x400, scoped, tag = 'output window, operand 0, single buffered']
    %12 = vsyncpa [#allocation5], 0
    %13 = vsyncpa [#allocation6], 0
    // Predicated region
    $region2: #{cnn_forward.1} parent=1 // pred_check
      _
    $region3: #{cnn_forward.1} parent=1 // pred_check_branch
      %15 = sbr.rel (0) target = $region5
    $region4: #{cnn_forward.1} parent=1 // pred_region
      _
    $region5: #{cnn_forward.1} parent=1 // pred_fallthru
      _
    // Predicated region
    $region6: #{cnn_forward.1} parent=1 // pred_check
      _
    $region7: #{cnn_forward.1} parent=1 // pred_check_branch
      %17 = sbr.rel (0) target = $region9
    $region8: #{cnn_forward.1} parent=1 // pred_region
      _
    $region9: #{cnn_forward.1} parent=1 // pred_fallthru
      _
    // Predicated region
    $region10: #{cnn_forward.1} parent=1 // pred_check
      _
    $region11: #{cnn_forward.1} parent=1 // pred_check_branch
      %19 = sbr.rel (0) target = $region13
    $region12: #{cnn_forward.1} parent=1 // pred_region
      _
    $region13: #{cnn_forward.1} parent=1 // pred_fallthru
      _
    // Predicated region
    $region14: #{cnn_forward.1} parent=1 // pred_check
      _
    $region15: #{cnn_forward.1} parent=1 // pred_check_branch
      %21 = sbr.rel (0) target = $region17
    $region16: #{cnn_forward.1} parent=1 // pred_region
      %s23 = ssub.s32 12288, 12288
      %24 = vsyncadd [#allocation5], %s23
      %s25 = sshll.u32 [#allocation4], 4
      %s26 = int_to_ptr.vmem [resolvable:$true] %s25
      %31 = dma.hbm_to_vmem [thread:$0]  %s3, 12288, %s26, [#allocation5], 256, 256, 16
    $region17: #{cnn_forward.1} parent=1 // pred_fallthru
      _
    // Predicated region
    $region18: #{cnn_forward.1} parent=1 // pred_check
      _
    $region19: #{cnn_forward.1} parent=1 // pred_check_branch
      %33 = sbr.rel (0) target = $region21
    $region20: #{cnn_forward.1} parent=1 // pred_region
      _
    $region21: #{cnn_forward.1} parent=1 // pred_fallthru
      _
    // Predicated region
    $region22: #{cnn_forward.1} parent=1 // pred_check
      _
    $region23: #{cnn_forward.1} parent=1 // pred_check_branch
      %35 = sbr.rel (0) target = $region25
    $region24: #{cnn_forward.1} parent=1 // pred_region
      _
    $region25: #{cnn_forward.1} parent=1 // pred_fallthru
      _
    // Predicated region
    $region26: #{cnn_forward.1} parent=1 // pred_check
      _
    $region27: #{cnn_forward.1} parent=1 // pred_check_branch
      %37 = sbr.rel (0) target = $region29
    $region28: #{cnn_forward.1} parent=1 // pred_region
      _
    $region29: #{cnn_forward.1} parent=1 // pred_fallthru
      _
    // Predicated region
    $region30: #{cnn_forward.1} parent=1 // pred_check
      _
    $region31: #{cnn_forward.1} parent=1 // pred_check_branch
      %39 = sbr.rel (0) target = $region33
    $region32: #{cnn_forward.1} parent=1 // pred_region
      %40 = dma.done [#allocation5], 12288
    $region33: #{cnn_forward.1} parent=1 // pred_fallthru
      _
    %vm41 = vcmask 122880
    %42 = vst.msk [vmem:[#allocation2] sm:$0x1] %vm41, 0.0
    %43 = vst.msk [vmem:[#allocation2 + $0x18] sm:$0x1] %vm41, 0.0
    %44 = vst.msk [vmem:[#allocation2 + $0x11] sm:$0x1] %vm41, 0.0
    %45 = vst.msk [vmem:[#allocation2 + $0x29] sm:$0x1] %vm41, 0.0
    %v46 = vld [vmem:[%s0] sm:$0xff]
    %v47 = vld [vmem:[%s0 + $0x8] sm:$0xff]
    %v48 = vld [vmem:[%s0 + $0x10] sm:$0xff]
    %v49 = vld [vmem:[%s0 + $0x18] sm:$0xff]
    %vm50 = vcmask 130048
    %51 = vst.msk [vmem:[#allocation2 + $0x1] sm:$0xff] %vm50, %v46
    %52 = vst.msk [vmem:[#allocation2 + $0x9] sm:$0xff] %vm50, %v47
    %53 = vst.msk [vmem:[#allocation2 + $0x19] sm:$0xff] %vm50, %v48
    %54 = vst.msk [vmem:[#allocation2 + $0x21] sm:$0xff] %vm50, %v49
    %v55 = vld [vmem:[#allocation2] ss:$2 sm:$0xff]
    %s56 = scalar_lea.vmem [#allocation2], 24
    %v57 = vld [vmem:[%s56] ss:$2 sm:$0xff]
    %v58 = vld [vmem:[%s1] sm:$0xff]
    %v59 = vld [vmem:[%s1 + $0x8] sm:$0xff]
    %v60 = vld [vmem:[%s1 + $0x10] sm:$0xff]
    %v61 = vld [vmem:[%s1 + $0x18] sm:$0xff]
    %s62 = scalar_lea.vmem [#allocation2], 1
    %v63 = vld [vmem:[%s62] ss:$2 sm:$0xff]
    %s64 = scalar_lea.vmem [#allocation2], 25
    %v65 = vld [vmem:[%s64] ss:$2 sm:$0xff]
    %s66 = scalar_lea.vmem %s1, 32
    %v67 = vld [vmem:[%s66] sm:$0xff]
    %v68 = vld [vmem:[%s66 + $0x8] sm:$0xff]
    %v69 = vld [vmem:[%s66 + $0x10] sm:$0xff]
    %v70 = vld [vmem:[%s66 + $0x18] sm:$0xff]
    %v72 = vsel %vm50, %v63, 0
    %v75 = vsel %vm50, %v65, 0
    %77 = vmatprep.subr.mxu0 %v68
    %78 = vmatpush1.msra.mxu0 %v67
    %79 = vmatprep.subr.mxu0 %v70
    %80 = vmatpush1.msra.mxu0 %v69
    %81 = vmatprep.subr.mxu0 0.0
    %82 = vmatpush1.msra.mxu0 0.0
    %83 = vmatprep.subr.mxu0 0.0
    %84 = vmatpush1.msra.mxu0 0.0
    %85 = vmatprep.subr.mxu0 0.0
    %86 = vmatpush1.msra.mxu0 0.0
    %87 = vmatprep.subr.mxu0 0.0
    %88 = vmatpush1.msra.mxu0 0.0
    %89 = vmatprep.subr.mxu0 0.0
    %90 = vmatpush1.msra.mxu0 0.0
    %91 = vmatprep.subr.mxu0 0.0
    %92 = vmatpush1.msra.mxu0 0.0
    %93 = vmatprep.subr.mxu0 0.0
    %94 = vmatpush1.msra.mxu0 0.0
    %95 = vmatprep.subr.mxu0 0.0
    %96 = vmatpush1.msra.mxu0 0.0
    %97 = vmatprep.subr.mxu0 0.0
    %98 = vmatpush1.msra.mxu0 0.0
    %99 = vmatprep.subr.mxu0 0.0
    %100 = vmatpush1.msra.mxu0 0.0
    %101 = vmatprep.subr.mxu0 0.0
    %102 = vmatpush1.msra.mxu0 0.0
    %103 = vmatprep.subr.mxu0 0.0
    %104 = vmatpush1.msra.mxu0 0.0
    %105 = vmatprep.subr.mxu0 0.0
    %106 = vmatpush1.msra.mxu0 0.0
    %107 = vmatprep.subr.mxu0 0.0
    %108 = vmatpush1.msra.mxu0 0.0
    %109 = vmatprep.subr.mxu0 0.0
    %110 = vmatpush1.msra.mxu0 0.0
    %111 = vmatprep.subr.mxu0 0.0
    %112 = vmatpush1.msra.mxu0 0.0
    %113 = vmatprep.subr.mxu0 0.0
    %114 = vmatpush1.msra.mxu0 0.0
    %115 = vmatprep.subr.mxu0 0.0
    %116 = vmatpush1.msra.mxu0 0.0
    %117 = vmatprep.subr.mxu0 0.0
    %118 = vmatpush1.msra.mxu0 0.0
    %119 = vmatprep.subr.mxu0 0.0
    %120 = vmatpush1.msra.mxu0 0.0
    %121 = vmatprep.subr.mxu0 0.0
    %122 = vmatpush1.msra.mxu0 0.0
    %123 = vmatprep.subr.mxu0 0.0
    %124 = vmatpush1.msra.mxu0 0.0
    %125 = vmatprep.subr.mxu0 0.0
    %126 = vmatpush1.msra.mxu0 0.0
    %127 = vmatprep.subr.mxu0 0.0
    %128 = vmatpush1.msra.mxu0 0.0
    %129 = vmatprep.subr.mxu0 0.0
    %130 = vmatpush1.msra.mxu0 0.0
    %131 = vmatprep.subr.mxu0 0.0
    %132 = vmatpush1.msra.mxu0 0.0
    %133 = vmatprep.subr.mxu0 0.0
    %134 = vmatpush1.msra.mxu0 0.0
    %135 = vmatprep.subr.mxu0 0.0
    %136 = vmatpush1.msra.mxu0 0.0
    %137 = vmatprep.subr.mxu0 0.0
    %138 = vmatpush1.msra.mxu0 0.0
    %139 = vmatprep.subr.mxu0 0.0
    %140 = vmatpush1.msra.mxu0 0.0
    %141 = vmatprep.mubr.f32.mxu0 0.0
    %142 = vmatmul.mubr.f32.gmra.mrb[0].mxu0 %v72
    %v143 = vpop.f32.mrb[0].mxu0
    %v144 = vadd.f32 0.0, %v143
    %v145 = vpop.f32.mrb[0].mxu0
    %v146 = vadd.f32 0.0, %v145
    %147 = vmatprep.mubr.f32.mxu0 0.0
    %148 = vmatmul.mubr.f32.gmra.mrb[0].mxu0 %v75
    %v149 = vpop.f32.mrb[0].mxu0
    %v150 = vadd.f32 0.0, %v149
    %v151 = vpop.f32.mrb[0].mxu0
    %v152 = vadd.f32 0.0, %v151
    %153 = vdwg.mxu0
    %v155 = vsel %vm50, %v55, 0
    %v158 = vsel %vm50, %v57, 0
    %160 = vmatprep.subr.mxu0 %v59
    %161 = vmatpush1.msra.mxu0 %v58
    %162 = vmatprep.subr.mxu0 %v61
    %163 = vmatpush1.msra.mxu0 %v60
    %164 = vmatprep.subr.mxu0 0.0
    %165 = vmatpush1.msra.mxu0 0.0
    %166 = vmatprep.subr.mxu0 0.0
    %167 = vmatpush1.msra.mxu0 0.0
    %168 = vmatprep.subr.mxu0 0.0
    %169 = vmatpush1.msra.mxu0 0.0
    %170 = vmatprep.subr.mxu0 0.0
    %171 = vmatpush1.msra.mxu0 0.0
    %172 = vmatprep.subr.mxu0 0.0
    %173 = vmatpush1.msra.mxu0 0.0
    %174 = vmatprep.subr.mxu0 0.0
    %175 = vmatpush1.msra.mxu0 0.0
    %176 = vmatprep.subr.mxu0 0.0
    %177 = vmatpush1.msra.mxu0 0.0
    %178 = vmatprep.subr.mxu0 0.0
    %179 = vmatpush1.msra.mxu0 0.0
    %180 = vmatprep.subr.mxu0 0.0
    %181 = vmatpush1.msra.mxu0 0.0
    %182 = vmatprep.subr.mxu0 0.0
    %183 = vmatpush1.msra.mxu0 0.0
    %184 = vmatprep.subr.mxu0 0.0
    %185 = vmatpush1.msra.mxu0 0.0
    %186 = vmatprep.subr.mxu0 0.0
    %187 = vmatpush1.msra.mxu0 0.0
    %188 = vmatprep.subr.mxu0 0.0
    %189 = vmatpush1.msra.mxu0 0.0
    %190 = vmatprep.subr.mxu0 0.0
    %191 = vmatpush1.msra.mxu0 0.0
    %192 = vmatprep.subr.mxu0 0.0
    %193 = vmatpush1.msra.mxu0 0.0
    %194 = vmatprep.subr.mxu0 0.0
    %195 = vmatpush1.msra.mxu0 0.0
    %196 = vmatprep.subr.mxu0 0.0
    %197 = vmatpush1.msra.mxu0 0.0
    %198 = vmatprep.subr.mxu0 0.0
    %199 = vmatpush1.msra.mxu0 0.0
    %200 = vmatprep.subr.mxu0 0.0
    %201 = vmatpush1.msra.mxu0 0.0
    %202 = vmatprep.subr.mxu0 0.0
    %203 = vmatpush1.msra.mxu0 0.0
    %204 = vmatprep.subr.mxu0 0.0
    %205 = vmatpush1.msra.mxu0 0.0
    %206 = vmatprep.subr.mxu0 0.0
    %207 = vmatpush1.msra.mxu0 0.0
    %208 = vmatprep.subr.mxu0 0.0
    %209 = vmatpush1.msra.mxu0 0.0
    %210 = vmatprep.subr.mxu0 0.0
    %211 = vmatpush1.msra.mxu0 0.0
    %212 = vmatprep.subr.mxu0 0.0
    %213 = vmatpush1.msra.mxu0 0.0
    %214 = vmatprep.subr.mxu0 0.0
    %215 = vmatpush1.msra.mxu0 0.0
    %216 = vmatprep.subr.mxu0 0.0
    %217 = vmatpush1.msra.mxu0 0.0
    %218 = vmatprep.subr.mxu0 0.0
    %219 = vmatpush1.msra.mxu0 0.0
    %220 = vmatprep.subr.mxu0 0.0
    %221 = vmatpush1.msra.mxu0 0.0
    %222 = vmatprep.subr.mxu0 0.0
    %223 = vmatpush1.msra.mxu0 0.0
    %224 = vmatprep.mubr.f32.mxu0 0.0
    %225 = vmatmul.mubr.f32.gmra.mrb[0].mxu0 %v155
    %v226 = vpop.f32.mrb[0].mxu0
    %v227 = vadd.f32 %v144, %v226
    %v228 = vpop.f32.mrb[0].mxu0
    %v229 = vadd.f32 %v146, %v228
    %230 = vmatprep.mubr.f32.mxu0 0.0
    %231 = vmatmul.mubr.f32.gmra.mrb[0].mxu0 %v158
    %v232 = vpop.f32.mrb[0].mxu0
    %v233 = vadd.f32 %v150, %v232
    %v234 = vpop.f32.mrb[0].mxu0
    %v235 = vadd.f32 %v152, %v234
    %236 = vdwg.mxu0
    %s237 = scalar_lea.vmem [#allocation2], 2
    %v238 = vld [vmem:[%s237] ss:$2 sm:$0xff]
    %s239 = scalar_lea.vmem [#allocation2], 26
    %v240 = vld [vmem:[%s239] ss:$2 sm:$0xff]
    %s241 = scalar_lea.vmem %s1, 64
    %v242 = vld [vmem:[%s241] sm:$0xff]
    %v243 = vld [vmem:[%s241 + $0x8] sm:$0xff]
    %v244 = vld [vmem:[%s241 + $0x10] sm:$0xff]
    %v245 = vld [vmem:[%s241 + $0x18] sm:$0xff]
    %v247 = vsel %vm50, %v238, 0
    %v250 = vsel %vm50, %v240, 0
    %252 = vmatprep.subr.mxu0 %v243
    %253 = vmatpush1.msra.mxu0 %v242
    %254 = vmatprep.subr.mxu0 %v245
    %255 = vmatpush1.msra.mxu0 %v244
    %256 = vmatprep.subr.mxu0 0.0
    %257 = vmatpush1.msra.mxu0 0.0
    %258 = vmatprep.subr.mxu0 0.0
    %259 = vmatpush1.msra.mxu0 0.0
    %260 = vmatprep.subr.mxu0 0.0
    %261 = vmatpush1.msra.mxu0 0.0
    %262 = vmatprep.subr.mxu0 0.0
    %263 = vmatpush1.msra.mxu0 0.0
    %264 = vmatprep.subr.mxu0 0.0
    %265 = vmatpush1.msra.mxu0 0.0
    %266 = vmatprep.subr.mxu0 0.0
    %267 = vmatpush1.msra.mxu0 0.0
    %268 = vmatprep.subr.mxu0 0.0
    %269 = vmatpush1.msra.mxu0 0.0
    %270 = vmatprep.subr.mxu0 0.0
    %271 = vmatpush1.msra.mxu0 0.0
    %272 = vmatprep.subr.mxu0 0.0
    %273 = vmatpush1.msra.mxu0 0.0
    %274 = vmatprep.subr.mxu0 0.0
    %275 = vmatpush1.msra.mxu0 0.0
    %276 = vmatprep.subr.mxu0 0.0
    %277 = vmatpush1.msra.mxu0 0.0
    %278 = vmatprep.subr.mxu0 0.0
    %279 = vmatpush1.msra.mxu0 0.0
    %280 = vmatprep.subr.mxu0 0.0
    %281 = vmatpush1.msra.mxu0 0.0
    %282 = vmatprep.subr.mxu0 0.0
    %283 = vmatpush1.msra.mxu0 0.0
    %284 = vmatprep.subr.mxu0 0.0
    %285 = vmatpush1.msra.mxu0 0.0
    %286 = vmatprep.subr.mxu0 0.0
    %287 = vmatpush1.msra.mxu0 0.0
    %288 = vmatprep.subr.mxu0 0.0
    %289 = vmatpush1.msra.mxu0 0.0
    %290 = vmatprep.subr.mxu0 0.0
    %291 = vmatpush1.msra.mxu0 0.0
    %292 = vmatprep.subr.mxu0 0.0
    %293 = vmatpush1.msra.mxu0 0.0
    %294 = vmatprep.subr.mxu0 0.0
    %295 = vmatpush1.msra.mxu0 0.0
    %296 = vmatprep.subr.mxu0 0.0
    %297 = vmatpush1.msra.mxu0 0.0
    %298 = vmatprep.subr.mxu0 0.0
    %299 = vmatpush1.msra.mxu0 0.0
    %300 = vmatprep.subr.mxu0 0.0
    %301 = vmatpush1.msra.mxu0 0.0
    %302 = vmatprep.subr.mxu0 0.0
    %303 = vmatpush1.msra.mxu0 0.0
    %304 = vmatprep.subr.mxu0 0.0
    %305 = vmatpush1.msra.mxu0 0.0
    %306 = vmatprep.subr.mxu0 0.0
    %307 = vmatpush1.msra.mxu0 0.0
    %308 = vmatprep.subr.mxu0 0.0
    %309 = vmatpush1.msra.mxu0 0.0
    %310 = vmatprep.subr.mxu0 0.0
    %311 = vmatpush1.msra.mxu0 0.0
    %312 = vmatprep.subr.mxu0 0.0
    %313 = vmatpush1.msra.mxu0 0.0
    %314 = vmatprep.subr.mxu0 0.0
    %315 = vmatpush1.msra.mxu0 0.0
    %316 = vmatprep.mubr.f32.mxu0 0.0
    %317 = vmatmul.mubr.f32.gmra.mrb[0].mxu0 %v247
    %v318 = vpop.f32.mrb[0].mxu0
    %v319 = vadd.f32 0.0, %v318
    %v320 = vpop.f32.mrb[0].mxu0
    %v321 = vadd.f32 0.0, %v320
    %322 = vmatprep.mubr.f32.mxu0 0.0
    %323 = vmatmul.mubr.f32.gmra.mrb[0].mxu0 %v250
    %v324 = vpop.f32.mrb[0].mxu0
    %v325 = vadd.f32 0.0, %v324
    %v326 = vpop.f32.mrb[0].mxu0
    %v327 = vadd.f32 0.0, %v326
    %328 = vdwg.mxu0
    %v329 = vadd.f32 %v227, %v319
    %v330 = vadd.f32 %v229, %v321
    %v331 = vadd.f32 %v233, %v325
    %v332 = vadd.f32 %v235, %v327
    %333 = vmatprep.subr.mxu0 %v68
    %334 = vmatpush1.msra.mxu0 %v67
    %335 = vmatprep.subr.mxu0 %v70
    %336 = vmatpush1.msra.mxu0 %v69
    %337 = vmatprep.subr.mxu0 0.0
    %338 = vmatpush1.msra.mxu0 0.0
    %339 = vmatprep.subr.mxu0 0.0
    %340 = vmatpush1.msra.mxu0 0.0
    %341 = vmatprep.subr.mxu0 0.0
    %342 = vmatpush1.msra.mxu0 0.0
    %343 = vmatprep.subr.mxu0 0.0
    %344 = vmatpush1.msra.mxu0 0.0
    %345 = vmatprep.subr.mxu0 0.0
    %346 = vmatpush1.msra.mxu0 0.0
    %347 = vmatprep.subr.mxu0 0.0
    %348 = vmatpush1.msra.mxu0 0.0
    %349 = vmatprep.subr.mxu0 0.0
    %350 = vmatpush1.msra.mxu0 0.0
    %351 = vmatprep.subr.mxu0 0.0
    %352 = vmatpush1.msra.mxu0 0.0
    %353 = vmatprep.subr.mxu0 0.0
    %354 = vmatpush1.msra.mxu0 0.0
    %355 = vmatprep.subr.mxu0 0.0
    %356 = vmatpush1.msra.mxu0 0.0
    %357 = vmatprep.subr.mxu0 0.0
    %358 = vmatpush1.msra.mxu0 0.0
    %359 = vmatprep.subr.mxu0 0.0
    %360 = vmatpush1.msra.mxu0 0.0
    %361 = vmatprep.subr.mxu0 0.0
    %362 = vmatpush1.msra.mxu0 0.0
    %363 = vmatprep.subr.mxu0 0.0
    %364 = vmatpush1.msra.mxu0 0.0
    %365 = vmatprep.subr.mxu0 0.0
    %366 = vmatpush1.msra.mxu0 0.0
    %367 = vmatprep.subr.mxu0 0.0
    %368 = vmatpush1.msra.mxu0 0.0
    %369 = vmatprep.subr.mxu0 0.0
    %370 = vmatpush1.msra.mxu0 0.0
    %371 = vmatprep.subr.mxu0 0.0
    %372 = vmatpush1.msra.mxu0 0.0
    %373 = vmatprep.subr.mxu0 0.0
    %374 = vmatpush1.msra.mxu0 0.0
    %375 = vmatprep.subr.mxu0 0.0
    %376 = vmatpush1.msra.mxu0 0.0
    %377 = vmatprep.subr.mxu0 0.0
    %378 = vmatpush1.msra.mxu0 0.0
    %379 = vmatprep.subr.mxu0 0.0
    %380 = vmatpush1.msra.mxu0 0.0
    %381 = vmatprep.subr.mxu0 0.0
    %382 = vmatpush1.msra.mxu0 0.0
    %383 = vmatprep.subr.mxu0 0.0
    %384 = vmatpush1.msra.mxu0 0.0
    %385 = vmatprep.subr.mxu0 0.0
    %386 = vmatpush1.msra.mxu0 0.0
    %387 = vmatprep.subr.mxu0 0.0
    %388 = vmatpush1.msra.mxu0 0.0
    %389 = vmatprep.subr.mxu0 0.0
    %390 = vmatpush1.msra.mxu0 0.0
    %391 = vmatprep.subr.mxu0 0.0
    %392 = vmatpush1.msra.mxu0 0.0
    %393 = vmatprep.subr.mxu0 0.0
    %394 = vmatpush1.msra.mxu0 0.0
    %395 = vmatprep.subr.mxu0 0.0
    %396 = vmatpush1.msra.mxu0 0.0
    %397 = vmatprep.mubr.f32.mxu0 0.0
    %398 = vmatmul.mubr.f32.gmra.mrb[0].mxu0 %v247
    %v399 = vpop.f32.mrb[0].mxu0
    %v400 = vadd.f32 0.0, %v399
    %v401 = vpop.f32.mrb[0].mxu0
    %v402 = vadd.f32 0.0, %v401
    %403 = vmatprep.mubr.f32.mxu0 0.0
    %404 = vmatmul.mubr.f32.gmra.mrb[0].mxu0 %v250
    %v405 = vpop.f32.mrb[0].mxu0
    %v406 = vadd.f32 0.0, %v405
    %v407 = vpop.f32.mrb[0].mxu0
    %v408 = vadd.f32 0.0, %v407
    %409 = vdwg.mxu0
    %410 = vmatprep.subr.mxu0 %v59
    %411 = vmatpush1.msra.mxu0 %v58
    %412 = vmatprep.subr.mxu0 %v61
    %413 = vmatpush1.msra.mxu0 %v60
    %414 = vmatprep.subr.mxu0 0.0
    %415 = vmatpush1.msra.mxu0 0.0
    %416 = vmatprep.subr.mxu0 0.0
    %417 = vmatpush1.msra.mxu0 0.0
    %418 = vmatprep.subr.mxu0 0.0
    %419 = vmatpush1.msra.mxu0 0.0
    %420 = vmatprep.subr.mxu0 0.0
    %421 = vmatpush1.msra.mxu0 0.0
    %422 = vmatprep.subr.mxu0 0.0
    %423 = vmatpush1.msra.mxu0 0.0
    %424 = vmatprep.subr.mxu0 0.0
    %425 = vmatpush1.msra.mxu0 0.0
    %426 = vmatprep.subr.mxu0 0.0
    %427 = vmatpush1.msra.mxu0 0.0
    %428 = vmatprep.subr.mxu0 0.0
    %429 = vmatpush1.msra.mxu0 0.0
    %430 = vmatprep.subr.mxu0 0.0
    %431 = vmatpush1.msra.mxu0 0.0
    %432 = vmatprep.subr.mxu0 0.0
    %433 = vmatpush1.msra.mxu0 0.0
    %434 = vmatprep.subr.mxu0 0.0
    %435 = vmatpush1.msra.mxu0 0.0
    %436 = vmatprep.subr.mxu0 0.0
    %437 = vmatpush1.msra.mxu0 0.0
    %438 = vmatprep.subr.mxu0 0.0
    %439 = vmatpush1.msra.mxu0 0.0
    %440 = vmatprep.subr.mxu0 0.0
    %441 = vmatpush1.msra.mxu0 0.0
    %442 = vmatprep.subr.mxu0 0.0
    %443 = vmatpush1.msra.mxu0 0.0
    %444 = vmatprep.subr.mxu0 0.0
    %445 = vmatpush1.msra.mxu0 0.0
    %446 = vmatprep.subr.mxu0 0.0
    %447 = vmatpush1.msra.mxu0 0.0
    %448 = vmatprep.subr.mxu0 0.0
    %449 = vmatpush1.msra.mxu0 0.0
    %450 = vmatprep.subr.mxu0 0.0
    %451 = vmatpush1.msra.mxu0 0.0
    %452 = vmatprep.subr.mxu0 0.0
    %453 = vmatpush1.msra.mxu0 0.0
    %454 = vmatprep.subr.mxu0 0.0
    %455 = vmatpush1.msra.mxu0 0.0
    %456 = vmatprep.subr.mxu0 0.0
    %457 = vmatpush1.msra.mxu0 0.0
    %458 = vmatprep.subr.mxu0 0.0
    %459 = vmatpush1.msra.mxu0 0.0
    %460 = vmatprep.subr.mxu0 0.0
    %461 = vmatpush1.msra.mxu0 0.0
    %462 = vmatprep.subr.mxu0 0.0
    %463 = vmatpush1.msra.mxu0 0.0
    %464 = vmatprep.subr.mxu0 0.0
    %465 = vmatpush1.msra.mxu0 0.0
    %466 = vmatprep.subr.mxu0 0.0
    %467 = vmatpush1.msra.mxu0 0.0
    %468 = vmatprep.subr.mxu0 0.0
    %469 = vmatpush1.msra.mxu0 0.0
    %470 = vmatprep.subr.mxu0 0.0
    %471 = vmatpush1.msra.mxu0 0.0
    %472 = vmatprep.subr.mxu0 0.0
    %473 = vmatpush1.msra.mxu0 0.0
    %474 = vmatprep.mubr.f32.mxu0 0.0
    %475 = vmatmul.mubr.f32.gmra.mrb[0].mxu0 %v72
    %v476 = vpop.f32.mrb[0].mxu0
    %v477 = vadd.f32 %v400, %v476
    %v478 = vpop.f32.mrb[0].mxu0
    %v479 = vadd.f32 %v402, %v478
    %480 = vmatprep.mubr.f32.mxu0 0.0
    %481 = vmatmul.mubr.f32.gmra.mrb[0].mxu0 %v75
    %v482 = vpop.f32.mrb[0].mxu0
    %v483 = vadd.f32 %v406, %v482
    %v484 = vpop.f32.mrb[0].mxu0
    %v485 = vadd.f32 %v408, %v484
    %486 = vdwg.mxu0
    %s487 = scalar_lea.vmem [#allocation2], 3
    %v488 = vld [vmem:[%s487] ss:$2 sm:$0xff]
    %s489 = scalar_lea.vmem [#allocation2], 27
    %v490 = vld [vmem:[%s489] ss:$2 sm:$0xff]
    %v492 = vsel %vm50, %v488, 0
    %v495 = vsel %vm50, %v490, 0
    %497 = vmatprep.subr.mxu0 %v243
    %498 = vmatpush1.msra.mxu0 %v242
    %499 = vmatprep.subr.mxu0 %v245
    %500 = vmatpush1.msra.mxu0 %v244
    %501 = vmatprep.subr.mxu0 0.0
    %502 = vmatpush1.msra.mxu0 0.0
    %503 = vmatprep.subr.mxu0 0.0
    %504 = vmatpush1.msra.mxu0 0.0
    %505 = vmatprep.subr.mxu0 0.0
    %506 = vmatpush1.msra.mxu0 0.0
    %507 = vmatprep.subr.mxu0 0.0
    %508 = vmatpush1.msra.mxu0 0.0
    %509 = vmatprep.subr.mxu0 0.0
    %510 = vmatpush1.msra.mxu0 0.0
    %511 = vmatprep.subr.mxu0 0.0
    %512 = vmatpush1.msra.mxu0 0.0
    %513 = vmatprep.subr.mxu0 0.0
    %514 = vmatpush1.msra.mxu0 0.0
    %515 = vmatprep.subr.mxu0 0.0
    %516 = vmatpush1.msra.mxu0 0.0
    %517 = vmatprep.subr.mxu0 0.0
    %518 = vmatpush1.msra.mxu0 0.0
    %519 = vmatprep.subr.mxu0 0.0
    %520 = vmatpush1.msra.mxu0 0.0
    %521 = vmatprep.subr.mxu0 0.0
    %522 = vmatpush1.msra.mxu0 0.0
    %523 = vmatprep.subr.mxu0 0.0
    %524 = vmatpush1.msra.mxu0 0.0
    %525 = vmatprep.subr.mxu0 0.0
    %526 = vmatpush1.msra.mxu0 0.0
    %527 = vmatprep.subr.mxu0 0.0
    %528 = vmatpush1.msra.mxu0 0.0
    %529 = vmatprep.subr.mxu0 0.0
    %530 = vmatpush1.msra.mxu0 0.0
    %531 = vmatprep.subr.mxu0 0.0
    %532 = vmatpush1.msra.mxu0 0.0
    %533 = vmatprep.subr.mxu0 0.0
    %534 = vmatpush1.msra.mxu0 0.0
    %535 = vmatprep.subr.mxu0 0.0
    %536 = vmatpush1.msra.mxu0 0.0
    %537 = vmatprep.subr.mxu0 0.0
    %538 = vmatpush1.msra.mxu0 0.0
    %539 = vmatprep.subr.mxu0 0.0
    %540 = vmatpush1.msra.mxu0 0.0
    %541 = vmatprep.subr.mxu0 0.0
    %542 = vmatpush1.msra.mxu0 0.0
    %543 = vmatprep.subr.mxu0 0.0
    %544 = vmatpush1.msra.mxu0 0.0
    %545 = vmatprep.subr.mxu0 0.0
    %546 = vmatpush1.msra.mxu0 0.0
    %547 = vmatprep.subr.mxu0 0.0
    %548 = vmatpush1.msra.mxu0 0.0
    %549 = vmatprep.subr.mxu0 0.0
    %550 = vmatpush1.msra.mxu0 0.0
    %551 = vmatprep.subr.mxu0 0.0
    %552 = vmatpush1.msra.mxu0 0.0
    %553 = vmatprep.subr.mxu0 0.0
    %554 = vmatpush1.msra.mxu0 0.0
    %555 = vmatprep.subr.mxu0 0.0
    %556 = vmatpush1.msra.mxu0 0.0
    %557 = vmatprep.subr.mxu0 0.0
    %558 = vmatpush1.msra.mxu0 0.0
    %559 = vmatprep.subr.mxu0 0.0
    %560 = vmatpush1.msra.mxu0 0.0
    %561 = vmatprep.mubr.f32.mxu0 0.0
    %562 = vmatmul.mubr.f32.gmra.mrb[0].mxu0 %v492
    %v563 = vpop.f32.mrb[0].mxu0
    %v564 = vadd.f32 0.0, %v563
    %v565 = vpop.f32.mrb[0].mxu0
    %v566 = vadd.f32 0.0, %v565
    %567 = vmatprep.mubr.f32.mxu0 0.0
    %568 = vmatmul.mubr.f32.gmra.mrb[0].mxu0 %v495
    %v569 = vpop.f32.mrb[0].mxu0
    %v570 = vadd.f32 0.0, %v569
    %v571 = vpop.f32.mrb[0].mxu0
    %v572 = vadd.f32 0.0, %v571
    %573 = vdwg.mxu0
    %v574 = vadd.f32 %v477, %v564
    %v575 = vadd.f32 %v479, %v566
    %v576 = vadd.f32 %v483, %v570
    %v577 = vadd.f32 %v485, %v572
    %v578 = vmax.f32 %v329, %v574
    %v579 = vmax.f32 %v330, %v575
    %v580 = vmax.f32 %v331, %v576
    %v581 = vmax.f32 %v332, %v577
    %v582 = vmax.f32 %v578, %v579
    %v583 = vmax.f32 %v580, %v581
    %v584 = vld [vmem:[%s2] sm:$0x1]
    %v586 = vlaneseq
    %v587 = vshrl.u32 %v586, 7
    %v588 = vsub.s32 0, %v587
    %v589 = vrot.slane %v584, %v588
    %v591 = vadd.f32 %v582, %v589
    %v592 = vadd.f32 %v583, %v589
    %v593 = vmax.f32 %v591, 0.0
    %v594 = vmax.f32 %v592, 0.0
    %595 = vst [vmem:[#allocation3] sm:$0x1] 0.0
    %596 = vst [vmem:[#allocation3 + $0x10] sm:$0x1] 0.0
    %597 = vst [vmem:[#allocation3 + $0x9] sm:$0x1] 0.0
    %598 = vst [vmem:[#allocation3 + $0x19] sm:$0x1] 0.0
    %599 = vst [vmem:[#allocation3 + $0x1] sm:$0xff] %v593
    %600 = vst [vmem:[#allocation3 + $0x11] sm:$0xff] %v594
    %v601 = vld [vmem:[#allocation3] ss:$2 sm:$0xf]
    %s602 = scalar_lea.vmem [#allocation3], 16
    %v603 = vld [vmem:[%s602] ss:$2 sm:$0xf]
    %v604 = vld [vmem:[#allocation4] sm:$0xff]
    %v605 = vld [vmem:[#allocation4 + $0x8] sm:$0xff]
    %v606 = vld [vmem:[#allocation4 + $0x10] sm:$0xff]
    %v607 = vld [vmem:[#allocation4 + $0x18] sm:$0xff]
    %v608 = vld [vmem:[#allocation4 + $0x20] sm:$0xff]
    %v609 = vld [vmem:[#allocation4 + $0x28] sm:$0xff]
    %v610 = vld [vmem:[#allocation4 + $0x30] sm:$0xff]
    %v611 = vld [vmem:[#allocation4 + $0x38] sm:$0xff]
    %v612 = vld [vmem:[#allocation4 + $0x40] sm:$0xff]
    %v613 = vld [vmem:[#allocation4 + $0x48] sm:$0xff]
    %v614 = vld [vmem:[#allocation4 + $0x50] sm:$0xff]
    %v615 = vld [vmem:[#allocation4 + $0x58] sm:$0xff]
    %v616 = vld [vmem:[#allocation4 + $0x60] sm:$0xff]
    %v617 = vld [vmem:[#allocation4 + $0x68] sm:$0xff]
    %v618 = vld [vmem:[#allocation4 + $0x70] sm:$0xff]
    %v619 = vld [vmem:[#allocation4 + $0x78] sm:$0xff]
    %v620 = vld [vmem:[#allocation4 + $0x80] sm:$0xff]
    %v621 = vld [vmem:[#allocation4 + $0x88] sm:$0xff]
    %v622 = vld [vmem:[#allocation4 + $0x90] sm:$0xff]
    %v623 = vld [vmem:[#allocation4 + $0x98] sm:$0xff]
    %v624 = vld [vmem:[#allocation4 + $0xa0] sm:$0xff]
    %v625 = vld [vmem:[#allocation4 + $0xa8] sm:$0xff]
    %v626 = vld [vmem:[#allocation4 + $0xb0] sm:$0xff]
    %v627 = vld [vmem:[#allocation4 + $0xb8] sm:$0xff]
    %v628 = vld [vmem:[#allocation4 + $0xc0] sm:$0xff]
    %v629 = vld [vmem:[#allocation4 + $0xc8] sm:$0xff]
    %v630 = vld [vmem:[#allocation4 + $0xd0] sm:$0xff]
    %v631 = vld [vmem:[#allocation4 + $0xd8] sm:$0xff]
    %v632 = vld [vmem:[#allocation4 + $0xe0] sm:$0xff]
    %v633 = vld [vmem:[#allocation4 + $0xe8] sm:$0xff]
    %v634 = vld [vmem:[#allocation4 + $0xf0] sm:$0xff]
    %v635 = vld [vmem:[#allocation4 + $0xf8] sm:$0xff]
    %s636 = scalar_lea.vmem [#allocation3], 1
    %v637 = vld [vmem:[%s636] ss:$2 sm:$0xf]
    %s638 = scalar_lea.vmem [#allocation3], 17
    %v639 = vld [vmem:[%s638] ss:$2 sm:$0xf]
    %s640 = scalar_lea.vmem [#allocation4], 256
    %v641 = vld [vmem:[%s640] sm:$0xff]
    %v642 = vld [vmem:[%s640 + $0x8] sm:$0xff]
    %v643 = vld [vmem:[%s640 + $0x10] sm:$0xff]
    %v644 = vld [vmem:[%s640 + $0x18] sm:$0xff]
    %v645 = vld [vmem:[%s640 + $0x20] sm:$0xff]
    %v646 = vld [vmem:[%s640 + $0x28] sm:$0xff]
    %v647 = vld [vmem:[%s640 + $0x30] sm:$0xff]
    %v648 = vld [vmem:[%s640 + $0x38] sm:$0xff]
    %v649 = vld [vmem:[%s640 + $0x40] sm:$0xff]
    %v650 = vld [vmem:[%s640 + $0x48] sm:$0xff]
    %v651 = vld [vmem:[%s640 + $0x50] sm:$0xff]
    %v652 = vld [vmem:[%s640 + $0x58] sm:$0xff]
    %v653 = vld [vmem:[%s640 + $0x60] sm:$0xff]
    %v654 = vld [vmem:[%s640 + $0x68] sm:$0xff]
    %v655 = vld [vmem:[%s640 + $0x70] sm:$0xff]
    %v656 = vld [vmem:[%s640 + $0x78] sm:$0xff]
    %v657 = vld [vmem:[%s640 + $0x80] sm:$0xff]
    %v658 = vld [vmem:[%s640 + $0x88] sm:$0xff]
    %v659 = vld [vmem:[%s640 + $0x90] sm:$0xff]
    %v660 = vld [vmem:[%s640 + $0x98] sm:$0xff]
    %v661 = vld [vmem:[%s640 + $0xa0] sm:$0xff]
    %v662 = vld [vmem:[%s640 + $0xa8] sm:$0xff]
    %v663 = vld [vmem:[%s640 + $0xb0] sm:$0xff]
    %v664 = vld [vmem:[%s640 + $0xb8] sm:$0xff]
    %v665 = vld [vmem:[%s640 + $0xc0] sm:$0xff]
    %v666 = vld [vmem:[%s640 + $0xc8] sm:$0xff]
    %v667 = vld [vmem:[%s640 + $0xd0] sm:$0xff]
    %v668 = vld [vmem:[%s640 + $0xd8] sm:$0xff]
    %v669 = vld [vmem:[%s640 + $0xe0] sm:$0xff]
    %v670 = vld [vmem:[%s640 + $0xe8] sm:$0xff]
    %v671 = vld [vmem:[%s640 + $0xf0] sm:$0xff]
    %v672 = vld [vmem:[%s640 + $0xf8] sm:$0xff]
    %v675 = vcombine.low %v637, %v639
    %677 = vmatprep.subr.mxu0 %v642
    %678 = vmatpush1.msra.mxu0 %v641
    %679 = vmatprep.subr.mxu0 %v644
    %680 = vmatpush1.msra.mxu0 %v643
    %681 = vmatprep.subr.mxu0 %v646
    %682 = vmatpush1.msra.mxu0 %v645
    %683 = vmatprep.subr.mxu0 %v648
    %684 = vmatpush1.msra.mxu0 %v647
    %685 = vmatprep.subr.mxu0 %v650
    %686 = vmatpush1.msra.mxu0 %v649
    %687 = vmatprep.subr.mxu0 %v652
    %688 = vmatpush1.msra.mxu0 %v651
    %689 = vmatprep.subr.mxu0 %v654
    %690 = vmatpush1.msra.mxu0 %v653
    %691 = vmatprep.subr.mxu0 %v656
    %692 = vmatpush1.msra.mxu0 %v655
    %693 = vmatprep.subr.mxu0 %v658
    %694 = vmatpush1.msra.mxu0 %v657
    %695 = vmatprep.subr.mxu0 %v660
    %696 = vmatpush1.msra.mxu0 %v659
    %697 = vmatprep.subr.mxu0 %v662
    %698 = vmatpush1.msra.mxu0 %v661
    %699 = vmatprep.subr.mxu0 %v664
    %700 = vmatpush1.msra.mxu0 %v663
    %701 = vmatprep.subr.mxu0 %v666
    %702 = vmatpush1.msra.mxu0 %v665
    %703 = vmatprep.subr.mxu0 %v668
    %704 = vmatpush1.msra.mxu0 %v667
    %705 = vmatprep.subr.mxu0 %v670
    %706 = vmatpush1.msra.mxu0 %v669
    %707 = vmatprep.subr.mxu0 %v672
    %708 = vmatpush1.msra.mxu0 %v671
    %709 = vmatprep.subr.mxu0 0.0
    %710 = vmatpush1.msra.mxu0 0.0
    %711 = vmatprep.subr.mxu0 0.0
    %712 = vmatpush1.msra.mxu0 0.0
    %713 = vmatprep.subr.mxu0 0.0
    %714 = vmatpush1.msra.mxu0 0.0
    %715 = vmatprep.subr.mxu0 0.0
    %716 = vmatpush1.msra.mxu0 0.0
    %717 = vmatprep.subr.mxu0 0.0
    %718 = vmatpush1.msra.mxu0 0.0
    %719 = vmatprep.subr.mxu0 0.0
    %720 = vmatpush1.msra.mxu0 0.0
    %721 = vmatprep.subr.mxu0 0.0
    %722 = vmatpush1.msra.mxu0 0.0
    %723 = vmatprep.subr.mxu0 0.0
    %724 = vmatpush1.msra.mxu0 0.0
    %725 = vmatprep.subr.mxu0 0.0
    %726 = vmatpush1.msra.mxu0 0.0
    %727 = vmatprep.subr.mxu0 0.0
    %728 = vmatpush1.msra.mxu0 0.0
    %729 = vmatprep.subr.mxu0 0.0
    %730 = vmatpush1.msra.mxu0 0.0
    %731 = vmatprep.subr.mxu0 0.0
    %732 = vmatpush1.msra.mxu0 0.0
    %733 = vmatprep.subr.mxu0 0.0
    %734 = vmatpush1.msra.mxu0 0.0
    %735 = vmatprep.subr.mxu0 0.0
    %736 = vmatpush1.msra.mxu0 0.0
    %737 = vmatprep.subr.mxu0 0.0
    %738 = vmatpush1.msra.mxu0 0.0
    %739 = vmatprep.subr.mxu0 0.0
    %740 = vmatpush1.msra.mxu0 0.0
    %741 = vmatprep.mubr.f32.mxu0 0.0
    %742 = vmatmul.mubr.f32.gmra.mrb[0].mxu0 %v675
    %v743 = vpop.f32.mrb[0].mxu0
    %v744 = vadd.f32 0.0, %v743
    %v745 = vpop.f32.mrb[0].mxu0
    %v746 = vadd.f32 0.0, %v745
    %747 = vdwg.mxu0
    %v750 = vcombine.low %v601, %v603
    %752 = vmatprep.subr.mxu0 %v605
    %753 = vmatpush1.msra.mxu0 %v604
    %754 = vmatprep.subr.mxu0 %v607
    %755 = vmatpush1.msra.mxu0 %v606
    %756 = vmatprep.subr.mxu0 %v609
    %757 = vmatpush1.msra.mxu0 %v608
    %758 = vmatprep.subr.mxu0 %v611
    %759 = vmatpush1.msra.mxu0 %v610
    %760 = vmatprep.subr.mxu0 %v613
    %761 = vmatpush1.msra.mxu0 %v612
    %762 = vmatprep.subr.mxu0 %v615
    %763 = vmatpush1.msra.mxu0 %v614
    %764 = vmatprep.subr.mxu0 %v617
    %765 = vmatpush1.msra.mxu0 %v616
    %766 = vmatprep.subr.mxu0 %v619
    %767 = vmatpush1.msra.mxu0 %v618
    %768 = vmatprep.subr.mxu0 %v621
    %769 = vmatpush1.msra.mxu0 %v620
    %770 = vmatprep.subr.mxu0 %v623
    %771 = vmatpush1.msra.mxu0 %v622
    %772 = vmatprep.subr.mxu0 %v625
    %773 = vmatpush1.msra.mxu0 %v624
    %774 = vmatprep.subr.mxu0 %v627
    %775 = vmatpush1.msra.mxu0 %v626
    %776 = vmatprep.subr.mxu0 %v629
    %777 = vmatpush1.msra.mxu0 %v628
    %778 = vmatprep.subr.mxu0 %v631
    %779 = vmatpush1.msra.mxu0 %v630
    %780 = vmatprep.subr.mxu0 %v633
    %781 = vmatpush1.msra.mxu0 %v632
    %782 = vmatprep.subr.mxu0 %v635
    %783 = vmatpush1.msra.mxu0 %v634
    %784 = vmatprep.subr.mxu0 0.0
    %785 = vmatpush1.msra.mxu0 0.0
    %786 = vmatprep.subr.mxu0 0.0
    %787 = vmatpush1.msra.mxu0 0.0
    %788 = vmatprep.subr.mxu0 0.0
    %789 = vmatpush1.msra.mxu0 0.0
    %790 = vmatprep.subr.mxu0 0.0
    %791 = vmatpush1.msra.mxu0 0.0
    %792 = vmatprep.subr.mxu0 0.0
    %793 = vmatpush1.msra.mxu0 0.0
    %794 = vmatprep.subr.mxu0 0.0
    %795 = vmatpush1.msra.mxu0 0.0
    %796 = vmatprep.subr.mxu0 0.0
    %797 = vmatpush1.msra.mxu0 0.0
    %798 = vmatprep.subr.mxu0 0.0
    %799 = vmatpush1.msra.mxu0 0.0
    %800 = vmatprep.subr.mxu0 0.0
    %801 = vmatpush1.msra.mxu0 0.0
    %802 = vmatprep.subr.mxu0 0.0
    %803 = vmatpush1.msra.mxu0 0.0
    %804 = vmatprep.subr.mxu0 0.0
    %805 = vmatpush1.msra.mxu0 0.0
    %806 = vmatprep.subr.mxu0 0.0
    %807 = vmatpush1.msra.mxu0 0.0
    %808 = vmatprep.subr.mxu0 0.0
    %809 = vmatpush1.msra.mxu0 0.0
    %810 = vmatprep.subr.mxu0 0.0
    %811 = vmatpush1.msra.mxu0 0.0
    %812 = vmatprep.subr.mxu0 0.0
    %813 = vmatpush1.msra.mxu0 0.0
    %814 = vmatprep.subr.mxu0 0.0
    %815 = vmatpush1.msra.mxu0 0.0
    %816 = vmatprep.mubr.f32.mxu0 0.0
    %817 = vmatmul.mubr.f32.gmra.mrb[0].mxu0 %v750
    %v818 = vpop.f32.mrb[0].mxu0
    %v819 = vadd.f32 %v744, %v818
    %v820 = vpop.f32.mrb[0].mxu0
    %v821 = vadd.f32 %v746, %v820
    %822 = vdwg.mxu0
    %s823 = scalar_lea.vmem [#allocation3], 2
    %v824 = vld [vmem:[%s823] ss:$2 sm:$0xf]
    %s825 = scalar_lea.vmem [#allocation3], 18
    %v826 = vld [vmem:[%s825] ss:$2 sm:$0xf]
    %s827 = scalar_lea.vmem [#allocation4], 512
    %v828 = vld [vmem:[%s827] sm:$0xff]
    %v829 = vld [vmem:[%s827 + $0x8] sm:$0xff]
    %v830 = vld [vmem:[%s827 + $0x10] sm:$0xff]
    %v831 = vld [vmem:[%s827 + $0x18] sm:$0xff]
    %v832 = vld [vmem:[%s827 + $0x20] sm:$0xff]
    %v833 = vld [vmem:[%s827 + $0x28] sm:$0xff]
    %v834 = vld [vmem:[%s827 + $0x30] sm:$0xff]
    %v835 = vld [vmem:[%s827 + $0x38] sm:$0xff]
    %v836 = vld [vmem:[%s827 + $0x40] sm:$0xff]
    %v837 = vld [vmem:[%s827 + $0x48] sm:$0xff]
    %v838 = vld [vmem:[%s827 + $0x50] sm:$0xff]
    %v839 = vld [vmem:[%s827 + $0x58] sm:$0xff]
    %v840 = vld [vmem:[%s827 + $0x60] sm:$0xff]
    %v841 = vld [vmem:[%s827 + $0x68] sm:$0xff]
    %v842 = vld [vmem:[%s827 + $0x70] sm:$0xff]
    %v843 = vld [vmem:[%s827 + $0x78] sm:$0xff]
    %v844 = vld [vmem:[%s827 + $0x80] sm:$0xff]
    %v845 = vld [vmem:[%s827 + $0x88] sm:$0xff]
    %v846 = vld [vmem:[%s827 + $0x90] sm:$0xff]
    %v847 = vld [vmem:[%s827 + $0x98] sm:$0xff]
    %v848 = vld [vmem:[%s827 + $0xa0] sm:$0xff]
    %v849 = vld [vmem:[%s827 + $0xa8] sm:$0xff]
    %v850 = vld [vmem:[%s827 + $0xb0] sm:$0xff]
    %v851 = vld [vmem:[%s827 + $0xb8] sm:$0xff]
    %v852 = vld [vmem:[%s827 + $0xc0] sm:$0xff]
    %v853 = vld [vmem:[%s827 + $0xc8] sm:$0xff]
    %v854 = vld [vmem:[%s827 + $0xd0] sm:$0xff]
    %v855 = vld [vmem:[%s827 + $0xd8] sm:$0xff]
    %v856 = vld [vmem:[%s827 + $0xe0] sm:$0xff]
    %v857 = vld [vmem:[%s827 + $0xe8] sm:$0xff]
    %v858 = vld [vmem:[%s827 + $0xf0] sm:$0xff]
    %v859 = vld [vmem:[%s827 + $0xf8] sm:$0xff]
    %v862 = vcombine.low %v824, %v826
    %864 = vmatprep.subr.mxu0 %v829
    %865 = vmatpush1.msra.mxu0 %v828
    %866 = vmatprep.subr.mxu0 %v831
    %867 = vmatpush1.msra.mxu0 %v830
    %868 = vmatprep.subr.mxu0 %v833
    %869 = vmatpush1.msra.mxu0 %v832
    %870 = vmatprep.subr.mxu0 %v835
    %871 = vmatpush1.msra.mxu0 %v834
    %872 = vmatprep.subr.mxu0 %v837
    %873 = vmatpush1.msra.mxu0 %v836
    %874 = vmatprep.subr.mxu0 %v839
    %875 = vmatpush1.msra.mxu0 %v838
    %876 = vmatprep.subr.mxu0 %v841
    %877 = vmatpush1.msra.mxu0 %v840
    %878 = vmatprep.subr.mxu0 %v843
    %879 = vmatpush1.msra.mxu0 %v842
    %880 = vmatprep.subr.mxu0 %v845
    %881 = vmatpush1.msra.mxu0 %v844
    %882 = vmatprep.subr.mxu0 %v847
    %883 = vmatpush1.msra.mxu0 %v846
    %884 = vmatprep.subr.mxu0 %v849
    %885 = vmatpush1.msra.mxu0 %v848
    %886 = vmatprep.subr.mxu0 %v851
    %887 = vmatpush1.msra.mxu0 %v850
    %888 = vmatprep.subr.mxu0 %v853
    %889 = vmatpush1.msra.mxu0 %v852
    %890 = vmatprep.subr.mxu0 %v855
    %891 = vmatpush1.msra.mxu0 %v854
    %892 = vmatprep.subr.mxu0 %v857
    %893 = vmatpush1.msra.mxu0 %v856
    %894 = vmatprep.subr.mxu0 %v859
    %895 = vmatpush1.msra.mxu0 %v858
    %896 = vmatprep.subr.mxu0 0.0
    %897 = vmatpush1.msra.mxu0 0.0
    %898 = vmatprep.subr.mxu0 0.0
    %899 = vmatpush1.msra.mxu0 0.0
    %900 = vmatprep.subr.mxu0 0.0
    %901 = vmatpush1.msra.mxu0 0.0
    %902 = vmatprep.subr.mxu0 0.0
    %903 = vmatpush1.msra.mxu0 0.0
    %904 = vmatprep.subr.mxu0 0.0
    %905 = vmatpush1.msra.mxu0 0.0
    %906 = vmatprep.subr.mxu0 0.0
    %907 = vmatpush1.msra.mxu0 0.0
    %908 = vmatprep.subr.mxu0 0.0
    %909 = vmatpush1.msra.mxu0 0.0
    %910 = vmatprep.subr.mxu0 0.0
    %911 = vmatpush1.msra.mxu0 0.0
    %912 = vmatprep.subr.mxu0 0.0
    %913 = vmatpush1.msra.mxu0 0.0
    %914 = vmatprep.subr.mxu0 0.0
    %915 = vmatpush1.msra.mxu0 0.0
    %916 = vmatprep.subr.mxu0 0.0
    %917 = vmatpush1.msra.mxu0 0.0
    %918 = vmatprep.subr.mxu0 0.0
    %919 = vmatpush1.msra.mxu0 0.0
    %920 = vmatprep.subr.mxu0 0.0
    %921 = vmatpush1.msra.mxu0 0.0
    %922 = vmatprep.subr.mxu0 0.0
    %923 = vmatpush1.msra.mxu0 0.0
    %924 = vmatprep.subr.mxu0 0.0
    %925 = vmatpush1.msra.mxu0 0.0
    %926 = vmatprep.subr.mxu0 0.0
    %927 = vmatpush1.msra.mxu0 0.0
    %928 = vmatprep.mubr.f32.mxu0 0.0
    %929 = vmatmul.mubr.f32.gmra.mrb[0].mxu0 %v862
    %v930 = vpop.f32.mrb[0].mxu0
    %v931 = vadd.f32 0.0, %v930
    %v932 = vpop.f32.mrb[0].mxu0
    %v933 = vadd.f32 0.0, %v932
    %934 = vdwg.mxu0
    %v935 = vadd.f32 %v819, %v931
    %v936 = vadd.f32 %v821, %v933
    %937 = vmatprep.subr.mxu0 %v642
    %938 = vmatpush1.msra.mxu0 %v641
    %939 = vmatprep.subr.mxu0 %v644
    %940 = vmatpush1.msra.mxu0 %v643
    %941 = vmatprep.subr.mxu0 %v646
    %942 = vmatpush1.msra.mxu0 %v645
    %943 = vmatprep.subr.mxu0 %v648
    %944 = vmatpush1.msra.mxu0 %v647
    %945 = vmatprep.subr.mxu0 %v650
    %946 = vmatpush1.msra.mxu0 %v649
    %947 = vmatprep.subr.mxu0 %v652
    %948 = vmatpush1.msra.mxu0 %v651
    %949 = vmatprep.subr.mxu0 %v654
    %950 = vmatpush1.msra.mxu0 %v653
    %951 = vmatprep.subr.mxu0 %v656
    %952 = vmatpush1.msra.mxu0 %v655
    %953 = vmatprep.subr.mxu0 %v658
    %954 = vmatpush1.msra.mxu0 %v657
    %955 = vmatprep.subr.mxu0 %v660
    %956 = vmatpush1.msra.mxu0 %v659
    %957 = vmatprep.subr.mxu0 %v662
    %958 = vmatpush1.msra.mxu0 %v661
    %959 = vmatprep.subr.mxu0 %v664
    %960 = vmatpush1.msra.mxu0 %v663
    %961 = vmatprep.subr.mxu0 %v666
    %962 = vmatpush1.msra.mxu0 %v665
    %963 = vmatprep.subr.mxu0 %v668
    %964 = vmatpush1.msra.mxu0 %v667
    %965 = vmatprep.subr.mxu0 %v670
    %966 = vmatpush1.msra.mxu0 %v669
    %967 = vmatprep.subr.mxu0 %v672
    %968 = vmatpush1.msra.mxu0 %v671
    %969 = vmatprep.subr.mxu0 0.0
    %970 = vmatpush1.msra.mxu0 0.0
    %971 = vmatprep.subr.mxu0 0.0
    %972 = vmatpush1.msra.mxu0 0.0
    %973 = vmatprep.subr.mxu0 0.0
    %974 = vmatpush1.msra.mxu0 0.0
    %975 = vmatprep.subr.mxu0 0.0
    %976 = vmatpush1.msra.mxu0 0.0
    %977 = vmatprep.subr.mxu0 0.0
    %978 = vmatpush1.msra.mxu0 0.0
    %979 = vmatprep.subr.mxu0 0.0
    %980 = vmatpush1.msra.mxu0 0.0
    %981 = vmatprep.subr.mxu0 0.0
    %982 = vmatpush1.msra.mxu0 0.0
    %983 = vmatprep.subr.mxu0 0.0
    %984 = vmatpush1.msra.mxu0 0.0
    %985 = vmatprep.subr.mxu0 0.0
    %986 = vmatpush1.msra.mxu0 0.0
    %987 = vmatprep.subr.mxu0 0.0
    %988 = vmatpush1.msra.mxu0 0.0
    %989 = vmatprep.subr.mxu0 0.0
    %990 = vmatpush1.msra.mxu0 0.0
    %991 = vmatprep.subr.mxu0 0.0
    %992 = vmatpush1.msra.mxu0 0.0
    %993 = vmatprep.subr.mxu0 0.0
    %994 = vmatpush1.msra.mxu0 0.0
    %995 = vmatprep.subr.mxu0 0.0
    %996 = vmatpush1.msra.mxu0 0.0
    %997 = vmatprep.subr.mxu0 0.0
    %998 = vmatpush1.msra.mxu0 0.0
    %999 = vmatprep.subr.mxu0 0.0
    %1000 = vmatpush1.msra.mxu0 0.0
    %1001 = vmatprep.mubr.f32.mxu0 0.0
    %1002 = vmatmul.mubr.f32.gmra.mrb[0].mxu0 %v862
    %v1003 = vpop.f32.mrb[0].mxu0
    %v1004 = vadd.f32 0.0, %v1003
    %v1005 = vpop.f32.mrb[0].mxu0
    %v1006 = vadd.f32 0.0, %v1005
    %1007 = vdwg.mxu0
    %1008 = vmatprep.subr.mxu0 %v605
    %1009 = vmatpush1.msra.mxu0 %v604
    %1010 = vmatprep.subr.mxu0 %v607
    %1011 = vmatpush1.msra.mxu0 %v606
    %1012 = vmatprep.subr.mxu0 %v609
    %1013 = vmatpush1.msra.mxu0 %v608
    %1014 = vmatprep.subr.mxu0 %v611
    %1015 = vmatpush1.msra.mxu0 %v610
    %1016 = vmatprep.subr.mxu0 %v613
    %1017 = vmatpush1.msra.mxu0 %v612
    %1018 = vmatprep.subr.mxu0 %v615
    %1019 = vmatpush1.msra.mxu0 %v614
    %1020 = vmatprep.subr.mxu0 %v617
    %1021 = vmatpush1.msra.mxu0 %v616
    %1022 = vmatprep.subr.mxu0 %v619
    %1023 = vmatpush1.msra.mxu0 %v618
    %1024 = vmatprep.subr.mxu0 %v621
    %1025 = vmatpush1.msra.mxu0 %v620
    %1026 = vmatprep.subr.mxu0 %v623
    %1027 = vmatpush1.msra.mxu0 %v622
    %1028 = vmatprep.subr.mxu0 %v625
    %1029 = vmatpush1.msra.mxu0 %v624
    %1030 = vmatprep.subr.mxu0 %v627
    %1031 = vmatpush1.msra.mxu0 %v626
    %1032 = vmatprep.subr.mxu0 %v629
    %1033 = vmatpush1.msra.mxu0 %v628
    %1034 = vmatprep.subr.mxu0 %v631
    %1035 = vmatpush1.msra.mxu0 %v630
    %1036 = vmatprep.subr.mxu0 %v633
    %1037 = vmatpush1.msra.mxu0 %v632
    %1038 = vmatprep.subr.mxu0 %v635
    %1039 = vmatpush1.msra.mxu0 %v634
    %1040 = vmatprep.subr.mxu0 0.0
    %1041 = vmatpush1.msra.mxu0 0.0
    %1042 = vmatprep.subr.mxu0 0.0
    %1043 = vmatpush1.msra.mxu0 0.0
    %1044 = vmatprep.subr.mxu0 0.0
    %1045 = vmatpush1.msra.mxu0 0.0
    %1046 = vmatprep.subr.mxu0 0.0
    %1047 = vmatpush1.msra.mxu0 0.0
    %1048 = vmatprep.subr.mxu0 0.0
    %1049 = vmatpush1.msra.mxu0 0.0
    %1050 = vmatprep.subr.mxu0 0.0
    %1051 = vmatpush1.msra.mxu0 0.0
    %1052 = vmatprep.subr.mxu0 0.0
    %1053 = vmatpush1.msra.mxu0 0.0
    %1054 = vmatprep.subr.mxu0 0.0
    %1055 = vmatpush1.msra.mxu0 0.0
    %1056 = vmatprep.subr.mxu0 0.0
    %1057 = vmatpush1.msra.mxu0 0.0
    %1058 = vmatprep.subr.mxu0 0.0
    %1059 = vmatpush1.msra.mxu0 0.0
    %1060 = vmatprep.subr.mxu0 0.0
    %1061 = vmatpush1.msra.mxu0 0.0
    %1062 = vmatprep.subr.mxu0 0.0
    %1063 = vmatpush1.msra.mxu0 0.0
    %1064 = vmatprep.subr.mxu0 0.0
    %1065 = vmatpush1.msra.mxu0 0.0
    %1066 = vmatprep.subr.mxu0 0.0
    %1067 = vmatpush1.msra.mxu0 0.0
    %1068 = vmatprep.subr.mxu0 0.0
    %1069 = vmatpush1.msra.mxu0 0.0
    %1070 = vmatprep.subr.mxu0 0.0
    %1071 = vmatpush1.msra.mxu0 0.0
    %1072 = vmatprep.mubr.f32.mxu0 0.0
    %1073 = vmatmul.mubr.f32.gmra.mrb[0].mxu0 %v675
    %v1074 = vpop.f32.mrb[0].mxu0
    %v1075 = vadd.f32 %v1004, %v1074
    %v1076 = vpop.f32.mrb[0].mxu0
    %v1077 = vadd.f32 %v1006, %v1076
    %1078 = vdwg.mxu0
    %s1079 = scalar_lea.vmem [#allocation3], 3
    %v1080 = vld [vmem:[%s1079] ss:$2 sm:$0xf]
    %s1081 = scalar_lea.vmem [#allocation3], 19
    %v1082 = vld [vmem:[%s1081] ss:$2 sm:$0xf]
    %v1085 = vcombine.low %v1080, %v1082
    %1087 = vmatprep.subr.mxu0 %v829
    %1088 = vmatpush1.msra.mxu0 %v828
    %1089 = vmatprep.subr.mxu0 %v831
    %1090 = vmatpush1.msra.mxu0 %v830
    %1091 = vmatprep.subr.mxu0 %v833
    %1092 = vmatpush1.msra.mxu0 %v832
    %1093 = vmatprep.subr.mxu0 %v835
    %1094 = vmatpush1.msra.mxu0 %v834
    %1095 = vmatprep.subr.mxu0 %v837
    %1096 = vmatpush1.msra.mxu0 %v836
    %1097 = vmatprep.subr.mxu0 %v839
    %1098 = vmatpush1.msra.mxu0 %v838
    %1099 = vmatprep.subr.mxu0 %v841
    %1100 = vmatpush1.msra.mxu0 %v840
    %1101 = vmatprep.subr.mxu0 %v843
    %1102 = vmatpush1.msra.mxu0 %v842
    %1103 = vmatprep.subr.mxu0 %v845
    %1104 = vmatpush1.msra.mxu0 %v844
    %1105 = vmatprep.subr.mxu0 %v847
    %1106 = vmatpush1.msra.mxu0 %v846
    %1107 = vmatprep.subr.mxu0 %v849
    %1108 = vmatpush1.msra.mxu0 %v848
    %1109 = vmatprep.subr.mxu0 %v851
    %1110 = vmatpush1.msra.mxu0 %v850
    %1111 = vmatprep.subr.mxu0 %v853
    %1112 = vmatpush1.msra.mxu0 %v852
    %1113 = vmatprep.subr.mxu0 %v855
    %1114 = vmatpush1.msra.mxu0 %v854
    %1115 = vmatprep.subr.mxu0 %v857
    %1116 = vmatpush1.msra.mxu0 %v856
    %1117 = vmatprep.subr.mxu0 %v859
    %1118 = vmatpush1.msra.mxu0 %v858
    %1119 = vmatprep.subr.mxu0 0.0
    %1120 = vmatpush1.msra.mxu0 0.0
    %1121 = vmatprep.subr.mxu0 0.0
    %1122 = vmatpush1.msra.mxu0 0.0
    %1123 = vmatprep.subr.mxu0 0.0
    %1124 = vmatpush1.msra.mxu0 0.0
    %1125 = vmatprep.subr.mxu0 0.0
    %1126 = vmatpush1.msra.mxu0 0.0
    %1127 = vmatprep.subr.mxu0 0.0
    %1128 = vmatpush1.msra.mxu0 0.0
    %1129 = vmatprep.subr.mxu0 0.0
    %1130 = vmatpush1.msra.mxu0 0.0
    %1131 = vmatprep.subr.mxu0 0.0
    %1132 = vmatpush1.msra.mxu0 0.0
    %1133 = vmatprep.subr.mxu0 0.0
    %1134 = vmatpush1.msra.mxu0 0.0
    %1135 = vmatprep.subr.mxu0 0.0
    %1136 = vmatpush1.msra.mxu0 0.0
    %1137 = vmatprep.subr.mxu0 0.0
    %1138 = vmatpush1.msra.mxu0 0.0
    %1139 = vmatprep.subr.mxu0 0.0
    %1140 = vmatpush1.msra.mxu0 0.0
    %1141 = vmatprep.subr.mxu0 0.0
    %1142 = vmatpush1.msra.mxu0 0.0
    %1143 = vmatprep.subr.mxu0 0.0
    %1144 = vmatpush1.msra.mxu0 0.0
    %1145 = vmatprep.subr.mxu0 0.0
    %1146 = vmatpush1.msra.mxu0 0.0
    %1147 = vmatprep.subr.mxu0 0.0
    %1148 = vmatpush1.msra.mxu0 0.0
    %1149 = vmatprep.subr.mxu0 0.0
    %1150 = vmatpush1.msra.mxu0 0.0
    %1151 = vmatprep.mubr.f32.mxu0 0.0
    %1152 = vmatmul.mubr.f32.gmra.mrb[0].mxu0 %v1085
    %v1153 = vpop.f32.mrb[0].mxu0
    %v1154 = vadd.f32 0.0, %v1153
    %v1155 = vpop.f32.mrb[0].mxu0
    %v1156 = vadd.f32 0.0, %v1155
    %1157 = vdwg.mxu0
    %v1158 = vadd.f32 %v1075, %v1154
    %v1159 = vadd.f32 %v1077, %v1156
    %v1160 = vmax.f32 %v935, %v1158
    %v1161 = vmax.f32 %v936, %v1159
    %v1162 = vmax.f32 %v1160, %v1161
    %v1163 = vld [vmem:[%s4] sm:$0x1]
    %v1165 = vlaneseq
    %v1166 = vshrl.u32 %v1165, 7
    %v1167 = vsub.s32 0, %v1166
    %v1168 = vrot.slane %v1163, %v1167
    %v1170 = vadd.f32 %v1162, %v1168
    %v1171 = vmax.f32 %v1170, 0.0
    %v1173 = vcombine.high %v1171, %v1171
    %v1174 = vlaneseq
    %v1175 = vshrl.u32 %v1174, 7
    %v1176 = vsub.s32 0, %v1175
    %v1177 = vrot.slane %v1171, %v1176
    %v1178 = vlaneseq
    %v1179 = vshrl.u32 %v1178, 7
    %v1180 = vsub.s32 0, %v1179
    %v1181 = vrot.slane %v1173, %v1180
    %vm1182 = vcmask 1041409
    %v1183 = vsel %vm1182, %v1181, %v1177
    %v1185 = vlaneseq
    %v1186 = vshrl.u32 %v1185, 7
    %v1187 = vsub.s32 1, %v1186
    %v1188 = vrot.slane %v1171, %v1187
    %v1189 = vlaneseq
    %v1190 = vshrl.u32 %v1189, 7
    %v1191 = vsub.s32 1, %v1190
    %v1192 = vrot.slane %v1173, %v1191
    %v1193 = vsel %vm1182, %v1192, %v1188
    %v1195 = vlaneseq
    %v1196 = vshrl.u32 %v1195, 7
    %v1197 = vsub.s32 2, %v1196
    %v1198 = vrot.slane %v1171, %v1197
    %v1199 = vlaneseq
    %v1200 = vshrl.u32 %v1199, 7
    %v1201 = vsub.s32 2, %v1200
    %v1202 = vrot.slane %v1173, %v1201
    %v1203 = vsel %vm1182, %v1202, %v1198
    %v1205 = vlaneseq
    %v1206 = vshrl.u32 %v1205, 7
    %v1207 = vsub.s32 3, %v1206
    %v1208 = vrot.slane %v1171, %v1207
    %v1209 = vlaneseq
    %v1210 = vshrl.u32 %v1209, 7
    %v1211 = vsub.s32 3, %v1210
    %v1212 = vrot.slane %v1173, %v1211
    %v1213 = vsel %vm1182, %v1212, %v1208
    %v1215 = vld [vmem:[%s5] sm:$0xff]
    %v1216 = vld [vmem:[%s5 + $0x8] sm:$0xff]
    %v1217 = vld [vmem:[%s5 + $0x10] sm:$0xff]
    %v1218 = vld [vmem:[%s5 + $0x18] sm:$0xff]
    %v1219 = vld [vmem:[%s5 + $0x20] sm:$0xff]
    %v1220 = vld [vmem:[%s5 + $0x28] sm:$0xff]
    %v1221 = vld [vmem:[%s5 + $0x30] sm:$0xff]
    %v1222 = vld [vmem:[%s5 + $0x38] sm:$0xff]
    %v1223 = vld [vmem:[%s5 + $0x40] sm:$0xff]
    %v1224 = vld [vmem:[%s5 + $0x48] sm:$0xff]
    %v1225 = vld [vmem:[%s5 + $0x50] sm:$0xff]
    %v1226 = vld [vmem:[%s5 + $0x58] sm:$0xff]
    %v1227 = vld [vmem:[%s5 + $0x60] sm:$0xff]
    %v1228 = vld [vmem:[%s5 + $0x68] sm:$0xff]
    %v1229 = vld [vmem:[%s5 + $0x70] sm:$0xff]
    %v1230 = vld [vmem:[%s5 + $0x78] sm:$0xff]
    %v1231 = vld [vmem:[%s5 + $0x80] sm:$0xff]
    %v1232 = vld [vmem:[%s5 + $0x88] sm:$0xff]
    %v1233 = vld [vmem:[%s5 + $0x90] sm:$0xff]
    %v1234 = vld [vmem:[%s5 + $0x98] sm:$0xff]
    %v1235 = vld [vmem:[%s5 + $0xa0] sm:$0xff]
    %v1236 = vld [vmem:[%s5 + $0xa8] sm:$0xff]
    %v1237 = vld [vmem:[%s5 + $0xb0] sm:$0xff]
    %v1238 = vld [vmem:[%s5 + $0xb8] sm:$0xff]
    %v1239 = vld [vmem:[%s5 + $0xc0] sm:$0xff]
    %v1240 = vld [vmem:[%s5 + $0xc8] sm:$0xff]
    %v1241 = vld [vmem:[%s5 + $0xd0] sm:$0xff]
    %v1242 = vld [vmem:[%s5 + $0xd8] sm:$0xff]
    %v1243 = vld [vmem:[%s5 + $0xe0] sm:$0xff]
    %v1244 = vld [vmem:[%s5 + $0xe8] sm:$0xff]
    %v1245 = vld [vmem:[%s5 + $0xf0] sm:$0xff]
    %v1246 = vld [vmem:[%s5 + $0xf8] sm:$0xff]
    %v1247 = vld [vmem:[%s5 + $0x100] sm:$0xff]
    %v1248 = vld [vmem:[%s5 + $0x108] sm:$0xff]
    %v1249 = vld [vmem:[%s5 + $0x110] sm:$0xff]
    %v1250 = vld [vmem:[%s5 + $0x118] sm:$0xff]
    %v1251 = vld [vmem:[%s5 + $0x120] sm:$0xff]
    %v1252 = vld [vmem:[%s5 + $0x128] sm:$0xff]
    %v1253 = vld [vmem:[%s5 + $0x130] sm:$0xff]
    %v1254 = vld [vmem:[%s5 + $0x138] sm:$0xff]
    %v1255 = vld [vmem:[%s5 + $0x140] sm:$0xff]
    %v1256 = vld [vmem:[%s5 + $0x148] sm:$0xff]
    %v1257 = vld [vmem:[%s5 + $0x150] sm:$0xff]
    %v1258 = vld [vmem:[%s5 + $0x158] sm:$0xff]
    %v1259 = vld [vmem:[%s5 + $0x160] sm:$0xff]
    %v1260 = vld [vmem:[%s5 + $0x168] sm:$0xff]
    %v1261 = vld [vmem:[%s5 + $0x170] sm:$0xff]
    %v1262 = vld [vmem:[%s5 + $0x178] sm:$0xff]
    %v1263 = vld [vmem:[%s5 + $0x180] sm:$0xff]
    %v1264 = vld [vmem:[%s5 + $0x188] sm:$0xff]
    %v1265 = vld [vmem:[%s5 + $0x190] sm:$0xff]
    %v1266 = vld [vmem:[%s5 + $0x198] sm:$0xff]
    %v1267 = vld [vmem:[%s5 + $0x1a0] sm:$0xff]
    %v1268 = vld [vmem:[%s5 + $0x1a8] sm:$0xff]
    %v1269 = vld [vmem:[%s5 + $0x1b0] sm:$0xff]
    %v1270 = vld [vmem:[%s5 + $0x1b8] sm:$0xff]
    %v1271 = vld [vmem:[%s5 + $0x1c0] sm:$0xff]
    %v1272 = vld [vmem:[%s5 + $0x1c8] sm:$0xff]
    %v1273 = vld [vmem:[%s5 + $0x1d0] sm:$0xff]
    %v1274 = vld [vmem:[%s5 + $0x1d8] sm:$0xff]
    %v1275 = vld [vmem:[%s5 + $0x1e0] sm:$0xff]
    %v1276 = vld [vmem:[%s5 + $0x1e8] sm:$0xff]
    %v1277 = vld [vmem:[%s5 + $0x1f0] sm:$0xff]
    %v1278 = vld [vmem:[%s5 + $0x1f8] sm:$0xff]
    %v1279 = vld [vmem:[%s6] sm:$0x1]
    %v1281 = vlaneseq
    %v1282 = vshrl.u32 %v1281, 7
    %v1283 = vsub.s32 0, %v1282
    %v1284 = vrot.slane %v1279, %v1283
    %1286 = vmatprep.subr.mxu0 0.0
    %1287 = vmatpush1.msra.mxu0 %v1215
    %1288 = vmatprep.subr.mxu0 0.0
    %1289 = vmatpush1.msra.mxu0 %v1216
    %1290 = vmatprep.subr.mxu0 0.0
    %1291 = vmatpush1.msra.mxu0 %v1217
    %1292 = vmatprep.subr.mxu0 0.0
    %1293 = vmatpush1.msra.mxu0 %v1218
    %1294 = vmatprep.subr.mxu0 0.0
    %1295 = vmatpush1.msra.mxu0 %v1219
    %1296 = vmatprep.subr.mxu0 0.0
    %1297 = vmatpush1.msra.mxu0 %v1220
    %1298 = vmatprep.subr.mxu0 0.0
    %1299 = vmatpush1.msra.mxu0 %v1221
    %1300 = vmatprep.subr.mxu0 0.0
    %1301 = vmatpush1.msra.mxu0 %v1222
    %1302 = vmatprep.subr.mxu0 0.0
    %1303 = vmatpush1.msra.mxu0 %v1223
    %1304 = vmatprep.subr.mxu0 0.0
    %1305 = vmatpush1.msra.mxu0 %v1224
    %1306 = vmatprep.subr.mxu0 0.0
    %1307 = vmatpush1.msra.mxu0 %v1225
    %1308 = vmatprep.subr.mxu0 0.0
    %1309 = vmatpush1.msra.mxu0 %v1226
    %1310 = vmatprep.subr.mxu0 0.0
    %1311 = vmatpush1.msra.mxu0 %v1227
    %1312 = vmatprep.subr.mxu0 0.0
    %1313 = vmatpush1.msra.mxu0 %v1228
    %1314 = vmatprep.subr.mxu0 0.0
    %1315 = vmatpush1.msra.mxu0 %v1229
    %1316 = vmatprep.subr.mxu0 0.0
    %1317 = vmatpush1.msra.mxu0 %v1230
    %1318 = vmatprep.subr.mxu0 0.0
    %1319 = vmatpush1.msra.mxu0 %v1231
    %1320 = vmatprep.subr.mxu0 0.0
    %1321 = vmatpush1.msra.mxu0 %v1232
    %1322 = vmatprep.subr.mxu0 0.0
    %1323 = vmatpush1.msra.mxu0 %v1233
    %1324 = vmatprep.subr.mxu0 0.0
    %1325 = vmatpush1.msra.mxu0 %v1234
    %1326 = vmatprep.subr.mxu0 0.0
    %1327 = vmatpush1.msra.mxu0 %v1235
    %1328 = vmatprep.subr.mxu0 0.0
    %1329 = vmatpush1.msra.mxu0 %v1236
    %1330 = vmatprep.subr.mxu0 0.0
    %1331 = vmatpush1.msra.mxu0 %v1237
    %1332 = vmatprep.subr.mxu0 0.0
    %1333 = vmatpush1.msra.mxu0 %v1238
    %1334 = vmatprep.subr.mxu0 0.0
    %1335 = vmatpush1.msra.mxu0 %v1239
    %1336 = vmatprep.subr.mxu0 0.0
    %1337 = vmatpush1.msra.mxu0 %v1240
    %1338 = vmatprep.subr.mxu0 0.0
    %1339 = vmatpush1.msra.mxu0 %v1241
    %1340 = vmatprep.subr.mxu0 0.0
    %1341 = vmatpush1.msra.mxu0 %v1242
    %1342 = vmatprep.subr.mxu0 0.0
    %1343 = vmatpush1.msra.mxu0 %v1243
    %1344 = vmatprep.subr.mxu0 0.0
    %1345 = vmatpush1.msra.mxu0 %v1244
    %1346 = vmatprep.subr.mxu0 0.0
    %1347 = vmatpush1.msra.mxu0 %v1245
    %1348 = vmatprep.subr.mxu0 0.0
    %1349 = vmatpush1.msra.mxu0 %v1246
    %1350 = vmatprep.mubr.f32.mxu0 %v1193
    %1351 = vmatmul.mubr.f32.gmra.mrb[0].mxu0 %v1183
    %v1352 = vpop.f32.mrb[0].mxu0
    %v1353 = vadd.f32 %v1284, %v1352
    %v1354 = vpop.f32.mrb[0].mxu0
    %1355 = vdwg.mxu0
    %1356 = vmatprep.subr.mxu0 0.0
    %1357 = vmatpush1.msra.mxu0 %v1247
    %1358 = vmatprep.subr.mxu0 0.0
    %1359 = vmatpush1.msra.mxu0 %v1248
    %1360 = vmatprep.subr.mxu0 0.0
    %1361 = vmatpush1.msra.mxu0 %v1249
    %1362 = vmatprep.subr.mxu0 0.0
    %1363 = vmatpush1.msra.mxu0 %v1250
    %1364 = vmatprep.subr.mxu0 0.0
    %1365 = vmatpush1.msra.mxu0 %v1251
    %1366 = vmatprep.subr.mxu0 0.0
    %1367 = vmatpush1.msra.mxu0 %v1252
    %1368 = vmatprep.subr.mxu0 0.0
    %1369 = vmatpush1.msra.mxu0 %v1253
    %1370 = vmatprep.subr.mxu0 0.0
    %1371 = vmatpush1.msra.mxu0 %v1254
    %1372 = vmatprep.subr.mxu0 0.0
    %1373 = vmatpush1.msra.mxu0 %v1255
    %1374 = vmatprep.subr.mxu0 0.0
    %1375 = vmatpush1.msra.mxu0 %v1256
    %1376 = vmatprep.subr.mxu0 0.0
    %1377 = vmatpush1.msra.mxu0 %v1257
    %1378 = vmatprep.subr.mxu0 0.0
    %1379 = vmatpush1.msra.mxu0 %v1258
    %1380 = vmatprep.subr.mxu0 0.0
    %1381 = vmatpush1.msra.mxu0 %v1259
    %1382 = vmatprep.subr.mxu0 0.0
    %1383 = vmatpush1.msra.mxu0 %v1260
    %1384 = vmatprep.subr.mxu0 0.0
    %1385 = vmatpush1.msra.mxu0 %v1261
    %1386 = vmatprep.subr.mxu0 0.0
    %1387 = vmatpush1.msra.mxu0 %v1262
    %1388 = vmatprep.subr.mxu0 0.0
    %1389 = vmatpush1.msra.mxu0 %v1263
    %1390 = vmatprep.subr.mxu0 0.0
    %1391 = vmatpush1.msra.mxu0 %v1264
    %1392 = vmatprep.subr.mxu0 0.0
    %1393 = vmatpush1.msra.mxu0 %v1265
    %1394 = vmatprep.subr.mxu0 0.0
    %1395 = vmatpush1.msra.mxu0 %v1266
    %1396 = vmatprep.subr.mxu0 0.0
    %1397 = vmatpush1.msra.mxu0 %v1267
    %1398 = vmatprep.subr.mxu0 0.0
    %1399 = vmatpush1.msra.mxu0 %v1268
    %1400 = vmatprep.subr.mxu0 0.0
    %1401 = vmatpush1.msra.mxu0 %v1269
    %1402 = vmatprep.subr.mxu0 0.0
    %1403 = vmatpush1.msra.mxu0 %v1270
    %1404 = vmatprep.subr.mxu0 0.0
    %1405 = vmatpush1.msra.mxu0 %v1271
    %1406 = vmatprep.subr.mxu0 0.0
    %1407 = vmatpush1.msra.mxu0 %v1272
    %1408 = vmatprep.subr.mxu0 0.0
    %1409 = vmatpush1.msra.mxu0 %v1273
    %1410 = vmatprep.subr.mxu0 0.0
    %1411 = vmatpush1.msra.mxu0 %v1274
    %1412 = vmatprep.subr.mxu0 0.0
    %1413 = vmatpush1.msra.mxu0 %v1275
    %1414 = vmatprep.subr.mxu0 0.0
    %1415 = vmatpush1.msra.mxu0 %v1276
    %1416 = vmatprep.subr.mxu0 0.0
    %1417 = vmatpush1.msra.mxu0 %v1277
    %1418 = vmatprep.subr.mxu0 0.0
    %1419 = vmatpush1.msra.mxu0 %v1278
    %1420 = vmatprep.mubr.f32.mxu0 %v1213
    %1421 = vmatmul.mubr.f32.gmra.mrb[0].mxu0 %v1203
    %v1422 = vpop.f32.mrb[0].mxu0
    %v1423 = vadd.f32 %v1353, %v1422
    %v1424 = vpop.f32.mrb[0].mxu0
    %1425 = vdwg.mxu0
    %vm1426 = vcmask 74752
    %1427 = vst.msk [vmem:[#allocation7] sm:$0x3] %vm1426, %v1423
    // Predicated region
    $region34: #{cnn_forward.1} parent=1 // pred_check
      _
    $region35: #{cnn_forward.1} parent=1 // pred_check_branch
      %1429 = sbr.rel (0) target = $region37
    $region36: #{cnn_forward.1} parent=1 // pred_region
      %s1431 = ssub.s32 32, 32
      %1432 = vsyncadd [#allocation6], %s1431
      %s1434 = sshll.u32 [#allocation7], 4
      %s1435 = int_to_ptr.vmem [resolvable:$true] %s1434
      %1437 = dma.vmem_to_hbm [thread:$0]  %s1435, 32, %s7, [#allocation6]
    $region37: #{cnn_forward.1} parent=1 // pred_fallthru
      _
    // Predicated region
    $region38: #{cnn_forward.1} parent=1 // pred_check
      _
    $region39: #{cnn_forward.1} parent=1 // pred_check_branch
      %1439 = sbr.rel (0) target = $region41
    $region40: #{cnn_forward.1} parent=1 // pred_region
      %1440 = dma.done [#allocation6], 32
    $region41: #{cnn_forward.1} parent=1 // pred_fallthru
      _
    %1441 = vsyncpa [#allocation5], 1
    %1442 = vsyncpa [#allocation6], 1

</llo_original>
